<compile_context>
chip_gen: v6e
topology: v6e:2x2x1
jax: 0.10.0
libtpu: 0.0.40
codegen_flags: <defaults>
</compile_context>

<pallas_src>
import functools
import math

import jax
import jax.numpy as jnp
from jax.experimental import pallas as pl
from jax.experimental.pallas import tpu as pltpu


_VMEM = pltpu.MemorySpace.VMEM
_SMEM = pltpu.MemorySpace.SMEM
_LN_EPS = 1e-12


def _ln(x, gamma, beta, eps):
    mu = jnp.mean(x, axis=-1, keepdims=True)
    var = jnp.mean((x - mu) ** 2, axis=-1, keepdims=True)
    return (x - mu) * jax.lax.rsqrt(var + eps) * gamma + beta


# ----------------------- kernel 1: embeddings LayerNorm ----------------------

def _embed_ln_kernel(emb_ref, g_ref, b_ref, o_ref, *, eps):
    o_ref[...] = _ln(emb_ref[...], g_ref[...], b_ref[...], eps)


def embed_layernorm(emb, gamma, beta):
    return pl.pallas_call(
        functools.partial(_embed_ln_kernel, eps=_LN_EPS),
        out_shape=jax.ShapeDtypeStruct(emb.shape, jnp.float32),
        in_specs=[pl.BlockSpec(memory_space=_VMEM)] * 3,
        out_specs=pl.BlockSpec(memory_space=_VMEM),
    )(emb, gamma, beta)


# ------------------- kernel 2: fused transformer encoder layer ---------------
# One grid step == one sequence (batch element).

def _encoder_layer_kernel(h_ref, bias_ref, wqkv_ref, bqkv_ref, wo_ref, bo_ref,
                          ln1_g_ref, ln1_b_ref, w1_ref, b1_ref, w2_ref, b2_ref,
                          ln2_g_ref, ln2_b_ref, o_ref, *, S, nh, dh, eps):
    H = nh * dh
    scale = 1.0 / math.sqrt(dh)

    h = h_ref[...]                                        # [S, H] f32
    h_bf = h.astype(jnp.bfloat16)

    # Fused Q|K|V projection: bf16 operands, f32 accumulation on the MXU.
    qkv = jnp.dot(h_bf, wqkv_ref[...],
                  preferred_element_type=jnp.float32) + bqkv_ref[...]
    q = qkv[:, :H].astype(jnp.bfloat16)
    v = qkv[:, 2 * H:].astype(jnp.bfloat16)
    # One K transpose per sequence, shared by all heads, so q @ k^T below is a
    # plain [S,dh]@[dh,S] MXU matmul with no per-head transpose.
    kT = qkv[:, H:2 * H].T.astype(jnp.bfloat16)           # [H, S]

    # additive attention-mask bias, broadcast once (hoisted out of head loop)
    bias_sq = jnp.broadcast_to(bias_ref[0], (S, S))       # [S, S]

    # TODO(synk): at real BERT sizes replace the static head loop + dh-wide
    # lane slices with a head grid axis / 128-aligned per-head layout.
    ctx_heads = []
    for hd in range(nh):
        c0 = hd * dh
        s = jnp.dot(q[:, c0:c0 + dh], kT[c0:c0 + dh, :],
                    preferred_element_type=jnp.float32) * scale + bias_sq
        m = jnp.max(s, axis=-1, keepdims=True)
        p = jnp.exp(s - m)
        p = p * pl.reciprocal(jnp.sum(p, axis=-1, keepdims=True),
                              approx=True)                # EUP slot
        ctx_heads.append(jnp.dot(p.astype(jnp.bfloat16), v[:, c0:c0 + dh],
                                 preferred_element_type=jnp.float32))
    # Lane-dense context assembled as a value (no VMEM scratch, no masked
    # narrow stores), fed straight into the output projection.
    ctx = jnp.concatenate(ctx_heads, axis=-1)             # [S, H]

    attn = jnp.dot(ctx.astype(jnp.bfloat16), wo_ref[...],
                   preferred_element_type=jnp.float32) + bo_ref[...]
    h1 = _ln(attn + h, ln1_g_ref[...], ln1_b_ref[...], eps)

    # TODO(synk): HF/PyTorch BERT uses exact (erf) GELU; tanh approximation is
    # used here since it maps cheaply onto the EUP.
    ff = jax.nn.gelu(
        jnp.dot(h1.astype(jnp.bfloat16), w1_ref[...],
                preferred_element_type=jnp.float32) + b1_ref[...],
        approximate=True)
    ff = jnp.dot(ff.astype(jnp.bfloat16), w2_ref[...],
                 preferred_element_type=jnp.float32) + b2_ref[...]
    o_ref[...] = _ln(ff + h1, ln2_g_ref[...], ln2_b_ref[...], eps)


def encoder_layer(h, bias3, lp, *, B, S, nh, dh):
    T, H = h.shape                                        # T == B * S
    weights = [lp["wqkv"], lp["bqkv"], lp["wo"], lp["bo"],
               lp["ln1_g"], lp["ln1_b"], lp["w1"], lp["b1"],
               lp["w2"], lp["b2"], lp["ln2_g"], lp["ln2_b"]]
    # Resident weight blocks: constant index_map across the batch grid.
    w_specs = [pl.BlockSpec(w.shape, lambda b: (0, 0)) for w in weights]
    return pl.pallas_call(
        functools.partial(_encoder_layer_kernel,
                          S=S, nh=nh, dh=dh, eps=_LN_EPS),
        grid=(B,),
        out_shape=jax.ShapeDtypeStruct((T, H), jnp.float32),
        in_specs=[pl.BlockSpec((S, H), lambda b: (b, 0)),
                  pl.BlockSpec((1, 1, S), lambda b: (b, 0, 0))] + w_specs,
        out_specs=pl.BlockSpec((S, H), lambda b: (b, 0)),
        input_output_aliases={0: 0},   # reuse h's HBM buffer for the output
        compiler_params=pltpu.CompilerParams(
            dimension_semantics=("parallel",)),
    )(h, bias3, *weights)


# --------- kernel 3: fused CLS select + pooler + fc + MLSM loss --------------

def _pool_fc_loss_kernel(h_ref, pw_ref, pb_ref, fw_ref, fb_ref, y_ref, o_ref,
                         *, B, S):
    # CLS rows (token 0 of every sequence) via one sublane-strided read.
    cls = h_ref[pl.ds(0, B, stride=S), :]                 # [B, H]

    pooled = jnp.tanh(
        jnp.dot(cls.astype(jnp.bfloat16), pw_ref[...],
                preferred_element_type=jnp.float32) + pb_ref[...])
    logits = jnp.dot(pooled.astype(jnp.bfloat16), fw_ref[...],
                     preferred_element_type=jnp.float32) + fb_ref[...]

    y = y_ref[...]
    # numerically stable MultiLabelSoftMarginLoss (softplus via log1p)
    sp = jnp.log1p(jnp.exp(-jnp.abs(logits)))
    log_sig_pos = -(jnp.maximum(-logits, 0.0) + sp)       # log sigmoid(x)
    log_sig_neg = -(jnp.maximum(logits, 0.0) + sp)        # log sigmoid(-x)
    per_elem = -(y * log_sig_pos + (1.0 - y) * log_sig_neg)
    # mean over classes per sample, then mean over batch == global mean here
    o_ref[0, 0] = jnp.mean(per_elem)


def pool_fc_loss(h, pool_w, pool_b, fc_w, fc_b, y, *, B, S):
    out = pl.pallas_call(
        functools.partial(_pool_fc_loss_kernel, B=B, S=S),
        out_shape=jax.ShapeDtypeStruct((1, 1), jnp.float32),
        in_specs=[pl.BlockSpec(memory_space=_VMEM)] * 6,
        out_specs=pl.BlockSpec(memory_space=_SMEM),       # scalar result: SMEM
    )(h, pool_w, pool_b, fc_w, fc_b, y)
    return out[0, 0]


# --------------------------- model (glue in JAX) -----------------------------

def init_params(key, cfg):
    H, I, V = cfg["hidden"], cfg["intermediate"], cfg["vocab"]
    L, P, Y = cfg["layers"], cfg["max_pos"], cfg["y_num"]
    std = 0.02
    bf = jnp.bfloat16
    ks = jax.random.split(key, 5 + L)

    def nrm(k, shape, dtype=jnp.float32):
        return (jax.random.normal(k, shape, jnp.float32) * std).astype(dtype)

    params = {
        "word_emb": nrm(ks[0], (V, H)),
        "pos_emb": nrm(ks[1], (P, H)),
        "type_emb": nrm(ks[2], (2, H)),
        "emb_ln_g": jnp.ones((1, H), jnp.float32),
        "emb_ln_b": jnp.zeros((1, H), jnp.float32),
        "pool_w": nrm(ks[3], (H, H), bf),                 # bf16 MXU weight
        "pool_b": jnp.zeros((1, H), jnp.float32),
        "fc_w": nrm(ks[4], (H, Y), bf),                   # self.fc weight (bf16)
        "fc_b": jnp.zeros((1, Y), jnp.float32),
        "layers": [],
    }
    for l in range(L):
        lk = jax.random.split(ks[5 + l], 6)
        params["layers"].append({
            # wq|wk|wv fused into one [H, 3H] bf16 MXU weight
            "wqkv": jnp.concatenate(
                [nrm(lk[0], (H, H)), nrm(lk[1], (H, H)), nrm(lk[2], (H, H))],
                axis=1).astype(bf),
            "bqkv": jnp.zeros((1, 3 * H), jnp.float32),
            "wo": nrm(lk[3], (H, H), bf), "bo": jnp.zeros((1, H), jnp.float32),
            "w1": nrm(lk[4], (H, I), bf), "b1": jnp.zeros((1, I), jnp.float32),
            "w2": nrm(lk[5], (I, H), bf), "b2": jnp.zeros((1, H), jnp.float32),
            "ln1_g": jnp.ones((1, H), jnp.float32),
            "ln1_b": jnp.zeros((1, H), jnp.float32),
            "ln2_g": jnp.ones((1, H), jnp.float32),
            "ln2_b": jnp.zeros((1, H), jnp.float32),
        })
    return params


def sentence_classification_forward(params, data_x, bert_mask, data_y, cfg):
    B, S = data_x.shape
    H, nh = cfg["hidden"], cfg["heads"]
    dh = H // nh

    # --- BERT embeddings: the token gather is XLA glue; LN is a Pallas kernel.
    emb = (params["word_emb"][data_x]
           + params["pos_emb"][None, :S, :]
           + params["type_emb"][0][None, None, :]).reshape(B * S, H)
    h = embed_layernorm(emb, params["emb_ln_g"], params["emb_ln_b"])

    # additive attention-mask bias, built once, broadcast in-kernel: [B, 1, S]
    bias3 = ((1.0 - bert_mask.astype(jnp.float32)) * -1e4).reshape(B, 1, S)

    # --- fused transformer encoder layers (one pallas_call per layer)
    for lp in params["layers"]:
        h = encoder_layer(h, bias3, lp, B=B, S=S, nh=nh, dh=dh)

    # --- fused CLS select + pooler(tanh) + self.fc + MultiLabelSoftMarginLoss
    return pool_fc_loss(h, params["pool_w"], params["pool_b"],
                        params["fc_w"], params["fc_b"],
                        data_y.astype(jnp.float32), B=B, S=S)


# --------------------------- main --------------------------------------------

if __name__ == "__main__":
    cfg = dict(hidden=32, heads=2, layers=2, intermediate=64,
               vocab=64, max_pos=16, y_num=5)

    key = jax.random.PRNGKey(0)
    pk, xk, yk = jax.random.split(key, 3)
    params = init_params(pk, cfg)

    B, S = 2, 8
    data_x = jax.random.randint(xk, (B, S), 0, cfg["vocab"], dtype=jnp.int32)
    bert_mask = jnp.concatenate(
        [jnp.ones((B, 6), jnp.int32), jnp.zeros((B, 2), jnp.int32)], axis=1)
    data_y = jax.random.bernoulli(yk, 0.4, (B, cfg["y_num"])).astype(jnp.float32)

    fwd = jax.jit(functools.partial(sentence_classification_forward, cfg=cfg))
    loss = fwd(params, data_x, bert_mask, data_y)
    jax.block_until_ready(loss)
    assert loss.shape == () and bool(jnp.isfinite(loss))
    print("KERNEL_OK")
</pallas_src>

<mosaic_0001>
module attributes {stable_mosaic.version = 11 : i64} {
  func.func @_embed_ln_kernel(%arg0: memref<16x32xf32, #tpu.memory_space<vmem>>, %arg1: memref<1x32xf32, #tpu.memory_space<vmem>>, %arg2: memref<1x32xf32, #tpu.memory_space<vmem>>, %arg3: memref<16x32xf32, #tpu.memory_space<vmem>>) attributes {dimension_semantics = [], scalar_prefetch = 0 : i64, scratch_operands = 0 : i64, tpu.core_type = #tpu.core_type<tc>} {
    %c0 = arith.constant 0 : index
    %c0_0 = arith.constant 0 : index
    %0 = vector.load %arg0[%c0, %c0_0] : memref<16x32xf32, #tpu.memory_space<vmem>>, vector<16x32xf32>
    %c0_1 = arith.constant 0 : index
    %c0_2 = arith.constant 0 : index
    %1 = vector.load %arg1[%c0_1, %c0_2] : memref<1x32xf32, #tpu.memory_space<vmem>>, vector<1x32xf32>
    %c0_3 = arith.constant 0 : index
    %c0_4 = arith.constant 0 : index
    %2 = vector.load %arg2[%c0_3, %c0_4] : memref<1x32xf32, #tpu.memory_space<vmem>>, vector<1x32xf32>
    %cst = arith.constant dense<0.000000e+00> : vector<16xf32>
    %3 = vector.multi_reduction <add>, %0, %cst [1] : vector<16x32xf32> to vector<16xf32>
    %4 = vector.shape_cast %3 : vector<16xf32> to vector<16x1xf32>
    %cst_5 = arith.constant 3.200000e+01 : f32
    %5 = vector.broadcast %cst_5 : f32 to vector<16x1xf32>
    %6 = arith.divf %4, %5 : vector<16x1xf32>
    %7 = vector.broadcast %6 : vector<16x1xf32> to vector<16x32xf32>
    %8 = arith.subf %0, %7 : vector<16x32xf32>
    %9 = arith.mulf %8, %8 : vector<16x32xf32>
    %cst_6 = arith.constant dense<0.000000e+00> : vector<16xf32>
    %10 = vector.multi_reduction <add>, %9, %cst_6 [1] : vector<16x32xf32> to vector<16xf32>
    %11 = vector.shape_cast %10 : vector<16xf32> to vector<16x1xf32>
    %cst_7 = arith.constant 3.200000e+01 : f32
    %12 = vector.broadcast %cst_7 : f32 to vector<16x1xf32>
    %13 = arith.divf %11, %12 : vector<16x1xf32>
    %14 = vector.broadcast %6 : vector<16x1xf32> to vector<16x32xf32>
    %15 = arith.subf %0, %14 : vector<16x32xf32>
    %cst_8 = arith.constant 9.99999996E-13 : f32
    %16 = vector.broadcast %cst_8 : f32 to vector<16x1xf32>
    %17 = arith.addf %13, %16 : vector<16x1xf32>
    %18 = math.rsqrt %17 : vector<16x1xf32>
    %19 = vector.broadcast %18 : vector<16x1xf32> to vector<16x32xf32>
    %20 = arith.mulf %15, %19 : vector<16x32xf32>
    %21 = vector.broadcast %1 : vector<1x32xf32> to vector<16x32xf32>
    %22 = arith.mulf %20, %21 : vector<16x32xf32>
    %23 = vector.broadcast %2 : vector<1x32xf32> to vector<16x32xf32>
    %24 = arith.addf %22, %23 : vector<16x32xf32>
    %c0_9 = arith.constant 0 : index
    %c0_10 = arith.constant 0 : index
    %25 = vector.load %arg3[%c0_9, %c0_10] : memref<16x32xf32, #tpu.memory_space<vmem>>, vector<16x32xf32>
    tpu.vector_store %arg3[%c0_9, %c0_10], %24 {strides = array<i32>} : memref<16x32xf32, #tpu.memory_space<vmem>>, vector<16x32xf32>,
    return
  }
}

module attributes {stable_mosaic.version = 11 : i64} {
  func.func @_pool_fc_loss_kernel(%arg0: memref<16x32xf32, #tpu.memory_space<vmem>>, %arg1: memref<32x32xbf16, #tpu.memory_space<vmem>>, %arg2: memref<1x32xf32, #tpu.memory_space<vmem>>, %arg3: memref<32x5xbf16, #tpu.memory_space<vmem>>, %arg4: memref<1x5xf32, #tpu.memory_space<vmem>>, %arg5: memref<2x5xf32, #tpu.memory_space<vmem>>, %arg6: memref<1x1xf32, #tpu.memory_space<smem>>) attributes {dimension_semantics = [], scalar_prefetch = 0 : i64, scratch_operands = 0 : i64, tpu.core_type = #tpu.core_type<tc>} {
    %c0 = arith.constant 0 : index
    %c0_0 = arith.constant 0 : index
    %0 = tpu.strided_load %arg0[%c0, %c0_0] {strides = array<i32: 8, 1>} : memref<16x32xf32, #tpu.memory_space<vmem>>, vector<2x32xf32>
    %1 = arith.truncf %0 : vector<2x32xf32> to vector<2x32xbf16>
    %c0_1 = arith.constant 0 : index
    %c0_2 = arith.constant 0 : index
    %2 = vector.load %arg1[%c0_1, %c0_2] : memref<32x32xbf16, #tpu.memory_space<vmem>>, vector<32x32xbf16>
    %cst = arith.constant dense<0.000000e+00> : vector<2x32xf32>
    %3 = tpu.matmul %1, %2, %cst {dimension_numbers = #tpu.dot_dimension_numbers<[1], [0], [0], [1], [0, 0, 1, 1], [], []>} : vector<2x32xbf16>, vector<32x32xbf16>, vector<2x32xf32> -> vector<2x32xf32>
    %c0_3 = arith.constant 0 : index
    %c0_4 = arith.constant 0 : index
    %4 = vector.load %arg2[%c0_3, %c0_4] : memref<1x32xf32, #tpu.memory_space<vmem>>, vector<1x32xf32>
    %5 = vector.broadcast %4 : vector<1x32xf32> to vector<2x32xf32>
    %6 = arith.addf %3, %5 : vector<2x32xf32>
    %7 = math.tanh %6 : vector<2x32xf32>
    %8 = arith.truncf %7 : vector<2x32xf32> to vector<2x32xbf16>
    %c0_5 = arith.constant 0 : index
    %c0_6 = arith.constant 0 : index
    %9 = vector.load %arg3[%c0_5, %c0_6] : memref<32x5xbf16, #tpu.memory_space<vmem>>, vector<32x5xbf16>
    %cst_7 = arith.constant dense<0.000000e+00> : vector<2x5xf32>
    %10 = tpu.matmul %8, %9, %cst_7 {dimension_numbers = #tpu.dot_dimension_numbers<[1], [0], [0], [1], [0, 0, 1, 1], [], []>} : vector<2x32xbf16>, vector<32x5xbf16>, vector<2x5xf32> -> vector<2x5xf32>
    %c0_8 = arith.constant 0 : index
    %c0_9 = arith.constant 0 : index
    %11 = vector.load %arg4[%c0_8, %c0_9] : memref<1x5xf32, #tpu.memory_space<vmem>>, vector<1x5xf32>
    %12 = vector.broadcast %11 : vector<1x5xf32> to vector<2x5xf32>
    %13 = arith.addf %10, %12 : vector<2x5xf32>
    %c0_10 = arith.constant 0 : index
    %c0_11 = arith.constant 0 : index
    %14 = vector.load %arg5[%c0_10, %c0_11] : memref<2x5xf32, #tpu.memory_space<vmem>>, vector<2x5xf32>
    %15 = math.absf %13 : vector<2x5xf32>
    %cst_12 = arith.constant 0.000000e+00 : f32
    %16 = vector.broadcast %cst_12 : f32 to vector<2x5xf32>
    %17 = arith.subf %16, %15 : vector<2x5xf32>
    %18 = math.exp %17 : vector<2x5xf32>
    %19 = math.log1p %18 : vector<2x5xf32>
    %cst_13 = arith.constant 0.000000e+00 : f32
    %20 = vector.broadcast %cst_13 : f32 to vector<2x5xf32>
    %21 = arith.subf %20, %13 : vector<2x5xf32>
    %cst_14 = arith.constant 0.000000e+00 : f32
    %22 = vector.broadcast %cst_14 : f32 to vector<2x5xf32>
    %23 = arith.maximumf %21, %22 : vector<2x5xf32>
    %24 = arith.addf %23, %19 : vector<2x5xf32>
    %cst_15 = arith.constant 0.000000e+00 : f32
    %25 = vector.broadcast %cst_15 : f32 to vector<2x5xf32>
    %26 = arith.subf %25, %24 : vector<2x5xf32>
    %cst_16 = arith.constant 0.000000e+00 : f32
    %27 = vector.broadcast %cst_16 : f32 to vector<2x5xf32>
    %28 = arith.maximumf %13, %27 : vector<2x5xf32>
    %29 = arith.addf %28, %19 : vector<2x5xf32>
    %cst_17 = arith.constant 0.000000e+00 : f32
    %30 = vector.broadcast %cst_17 : f32 to vector<2x5xf32>
    %31 = arith.subf %30, %29 : vector<2x5xf32>
    %32 = arith.mulf %14, %26 : vector<2x5xf32>
    %cst_18 = arith.constant 1.000000e+00 : f32
    %33 = vector.broadcast %cst_18 : f32 to vector<2x5xf32>
    %34 = arith.subf %33, %14 : vector<2x5xf32>
    %35 = arith.mulf %34, %31 : vector<2x5xf32>
    %36 = arith.addf %32, %35 : vector<2x5xf32>
    %cst_19 = arith.constant 0.000000e+00 : f32
    %37 = vector.broadcast %cst_19 : f32 to vector<2x5xf32>
    %38 = arith.subf %37, %36 : vector<2x5xf32>
    %39 = vector.shape_cast %38 : vector<2x5xf32> to vector<1x2x5xf32>
    %cst_20 = arith.constant dense<0.000000e+00> : vector<1xf32>
    %40 = vector.multi_reduction <add>, %39, %cst_20 [1, 2] : vector<1x2x5xf32> to vector<1xf32>
    %41 = vector.shape_cast %40 : vector<1xf32> to vector<1x1x1xf32>
    %42 = vector.extract %41[0, 0, 0] : f32 from vector<1x1x1xf32>
    %cst_21 = arith.constant 1.000000e+01 : f32
    %43 = arith.divf %42, %cst_21 : f32
    %c0_22 = arith.constant 0 : index
    %c0_23 = arith.constant 0 : index
    %44 = memref.load %arg6[%c0_22, %c0_23] : memref<1x1xf32, #tpu.memory_space<smem>>
    memref.store %43, %arg6[%c0_22, %c0_23] : memref<1x1xf32, #tpu.memory_space<smem>>
    return
  }
}

module attributes {stable_mosaic.version = 11 : i64} {
  func.func @_encoder_layer_kernel(%arg0: i32, %arg1: memref<8x32xf32, #tpu.memory_space<vmem>>, %arg2: memref<1x1x8xf32, #tpu.memory_space<vmem>>, %arg3: memref<32x96xbf16, #tpu.memory_space<vmem>>, %arg4: memref<1x96xf32, #tpu.memory_space<vmem>>, %arg5: memref<32x32xbf16, #tpu.memory_space<vmem>>, %arg6: memref<1x32xf32, #tpu.memory_space<vmem>>, %arg7: memref<1x32xf32, #tpu.memory_space<vmem>>, %arg8: memref<1x32xf32, #tpu.memory_space<vmem>>, %arg9: memref<32x64xbf16, #tpu.memory_space<vmem>>, %arg10: memref<1x64xf32, #tpu.memory_space<vmem>>, %arg11: memref<64x32xbf16, #tpu.memory_space<vmem>>, %arg12: memref<1x32xf32, #tpu.memory_space<vmem>>, %arg13: memref<1x32xf32, #tpu.memory_space<vmem>>, %arg14: memref<1x32xf32, #tpu.memory_space<vmem>>, %arg15: memref<8x32xf32, #tpu.memory_space<vmem>>) attributes {dimension_semantics = [#tpu.dimension_semantics<parallel>], iteration_bounds = array<i64: 2>, scalar_prefetch = 0 : i64, scratch_operands = 0 : i64, tpu.core_type = #tpu.core_type<tc>, window_params = [{transform_indices = @transform_0, window_bounds = array<i64: 8, 32>}, {transform_indices = @transform_1, window_bounds = array<i64: 1, 1, 8>}, {pipeline_mode = #tpu.pipeline_mode<synchronous>, transform_indices = @transform_2, window_bounds = array<i64: 32, 96>}, {pipeline_mode = #tpu.pipeline_mode<synchronous>, transform_indices = @transform_3, window_bounds = array<i64: 1, 96>}, {pipeline_mode = #tpu.pipeline_mode<synchronous>, transform_indices = @transform_4, window_bounds = array<i64: 32, 32>}, {pipeline_mode = #tpu.pipeline_mode<synchronous>, transform_indices = @transform_5, window_bounds = array<i64: 1, 32>}, {pipeline_mode = #tpu.pipeline_mode<synchronous>, transform_indices = @transform_6, window_bounds = array<i64: 1, 32>}, {pipeline_mode = #tpu.pipeline_mode<synchronous>, transform_indices = @transform_7, window_bounds = array<i64: 1, 32>}, {pipeline_mode = #tpu.pipeline_mode<synchronous>, transform_indices = @transform_8, window_bounds = array<i64: 32, 64>}, {pipeline_mode = #tpu.pipeline_mode<synchronous>, transform_indices = @transform_9, window_bounds = array<i64: 1, 64>}, {pipeline_mode = #tpu.pipeline_mode<synchronous>, transform_indices = @transform_10, window_bounds = array<i64: 64, 32>}, {pipeline_mode = #tpu.pipeline_mode<synchronous>, transform_indices = @transform_11, window_bounds = array<i64: 1, 32>}, {pipeline_mode = #tpu.pipeline_mode<synchronous>, transform_indices = @transform_12, window_bounds = array<i64: 1, 32>}, {pipeline_mode = #tpu.pipeline_mode<synchronous>, transform_indices = @transform_13, window_bounds = array<i64: 1, 32>}, {transform_indices = @transform_14, window_bounds = array<i64: 8, 32>}]} {
    %c0 = arith.constant 0 : index
    %c0_0 = arith.constant 0 : index
    %0 = vector.load %arg1[%c0, %c0_0] : memref<8x32xf32, #tpu.memory_space<vmem>>, vector<8x32xf32>
    %1 = arith.truncf %0 : vector<8x32xf32> to vector<8x32xbf16>
    %c0_1 = arith.constant 0 : index
    %c0_2 = arith.constant 0 : index
    %2 = vector.load %arg3[%c0_1, %c0_2] : memref<32x96xbf16, #tpu.memory_space<vmem>>, vector<32x96xbf16>
    %cst = arith.constant dense<0.000000e+00> : vector<8x96xf32>
    %3 = tpu.matmul %1, %2, %cst {dimension_numbers = #tpu.dot_dimension_numbers<[1], [0], [0], [1], [0, 0, 1, 1], [], []>} : vector<8x32xbf16>, vector<32x96xbf16>, vector<8x96xf32> -> vector<8x96xf32>
    %c0_3 = arith.constant 0 : index
    %c0_4 = arith.constant 0 : index
    %4 = vector.load %arg4[%c0_3, %c0_4] : memref<1x96xf32, #tpu.memory_space<vmem>>, vector<1x96xf32>
    %5 = vector.broadcast %4 : vector<1x96xf32> to vector<8x96xf32>
    %6 = arith.addf %3, %5 : vector<8x96xf32>
    %7 = vector.extract_strided_slice %6 {offsets = [0, 0], sizes = [8, 32], strides = [1, 1]} : vector<8x96xf32> to vector<8x32xf32>
    %8 = arith.truncf %7 : vector<8x32xf32> to vector<8x32xbf16>
    %9 = vector.extract_strided_slice %6 {offsets = [0, 64], sizes = [8, 32], strides = [1, 1]} : vector<8x96xf32> to vector<8x32xf32>
    %10 = arith.truncf %9 : vector<8x32xf32> to vector<8x32xbf16>
    %11 = vector.extract_strided_slice %6 {offsets = [0, 32], sizes = [8, 32], strides = [1, 1]} : vector<8x96xf32> to vector<8x32xf32>
    %12 = tpu.transpose %11, [1, 0] : vector<8x32xf32> -> vector<32x8xf32>
    %13 = arith.truncf %12 : vector<32x8xf32> to vector<32x8xbf16>
    %c0_5 = arith.constant 0 : index
    %c0_6 = arith.constant 0 : index
    %c0_7 = arith.constant 0 : index
    %14 = vector.load %arg2[%c0_5, %c0_6, %c0_7] : memref<1x1x8xf32, #tpu.memory_space<vmem>>, vector<1x1x8xf32>
    %15 = vector.shape_cast %14 : vector<1x1x8xf32> to vector<1x8xf32>
    %16 = vector.shape_cast %15 : vector<1x8xf32> to vector<1x8xf32>
    %17 = vector.broadcast %16 : vector<1x8xf32> to vector<8x8xf32>
    %18 = vector.extract_strided_slice %8 {offsets = [0, 0], sizes = [8, 16], strides = [1, 1]} : vector<8x32xbf16> to vector<8x16xbf16>
    %19 = vector.extract_strided_slice %13 {offsets = [0, 0], sizes = [16, 8], strides = [1, 1]} : vector<32x8xbf16> to vector<16x8xbf16>
    %cst_8 = arith.constant dense<0.000000e+00> : vector<8x8xf32>
    %20 = tpu.matmul %18, %19, %cst_8 {dimension_numbers = #tpu.dot_dimension_numbers<[1], [0], [0], [1], [0, 0, 1, 1], [], []>} : vector<8x16xbf16>, vector<16x8xbf16>, vector<8x8xf32> -> vector<8x8xf32>
    %cst_9 = arith.constant 2.500000e-01 : f32
    %21 = vector.broadcast %cst_9 : f32 to vector<8x8xf32>
    %22 = arith.mulf %20, %21 : vector<8x8xf32>
    %23 = arith.addf %22, %17 : vector<8x8xf32>
    %cst_10 = arith.constant dense<0xFF800000> : vector<8xf32>
    %24 = vector.multi_reduction <maximumf>, %23, %cst_10 [1] : vector<8x8xf32> to vector<8xf32>
    %25 = vector.shape_cast %24 : vector<8xf32> to vector<8x1xf32>
    %26 = vector.broadcast %25 : vector<8x1xf32> to vector<8x8xf32>
    %27 = arith.subf %23, %26 : vector<8x8xf32>
    %28 = math.exp %27 : vector<8x8xf32>
    %cst_11 = arith.constant dense<0.000000e+00> : vector<8xf32>
    %29 = vector.multi_reduction <add>, %28, %cst_11 [1] : vector<8x8xf32> to vector<8xf32>
    %30 = vector.shape_cast %29 : vector<8xf32> to vector<8x1xf32>
    %31 = tpu.reciprocal %30 {approx = true} : vector<8x1xf32> -> vector<8x1xf32>
    %32 = vector.broadcast %31 : vector<8x1xf32> to vector<8x8xf32>
    %33 = arith.mulf %28, %32 : vector<8x8xf32>
    %34 = arith.truncf %33 : vector<8x8xf32> to vector<8x8xbf16>
    %35 = vector.extract_strided_slice %10 {offsets = [0, 0], sizes = [8, 16], strides = [1, 1]} : vector<8x32xbf16> to vector<8x16xbf16>
    %cst_12 = arith.constant dense<0.000000e+00> : vector<8x16xf32>
    %36 = tpu.matmul %34, %35, %cst_12 {dimension_numbers = #tpu.dot_dimension_numbers<[1], [0], [0], [1], [0, 0, 1, 1], [], []>} : vector<8x8xbf16>, vector<8x16xbf16>, vector<8x16xf32> -> vector<8x16xf32>
    %37 = vector.extract_strided_slice %8 {offsets = [0, 16], sizes = [8, 16], strides = [1, 1]} : vector<8x32xbf16> to vector<8x16xbf16>
    %38 = vector.extract_strided_slice %13 {offsets = [16, 0], sizes = [16, 8], strides = [1, 1]} : vector<32x8xbf16> to vector<16x8xbf16>
    %cst_13 = arith.constant dense<0.000000e+00> : vector<8x8xf32>
    %39 = tpu.matmul %37, %38, %cst_13 {dimension_numbers = #tpu.dot_dimension_numbers<[1], [0], [0], [1], [0, 0, 1, 1], [], []>} : vector<8x16xbf16>, vector<16x8xbf16>, vector<8x8xf32> -> vector<8x8xf32>
    %cst_14 = arith.constant 2.500000e-01 : f32
    %40 = vector.broadcast %cst_14 : f32 to vector<8x8xf32>
    %41 = arith.mulf %39, %40 : vector<8x8xf32>
    %42 = arith.addf %41, %17 : vector<8x8xf32>
    %cst_15 = arith.constant dense<0xFF800000> : vector<8xf32>
    %43 = vector.multi_reduction <maximumf>, %42, %cst_15 [1] : vector<8x8xf32> to vector<8xf32>
    %44 = vector.shape_cast %43 : vector<8xf32> to vector<8x1xf32>
    %45 = vector.broadcast %44 : vector<8x1xf32> to vector<8x8xf32>
    %46 = arith.subf %42, %45 : vector<8x8xf32>
    %47 = math.exp %46 : vector<8x8xf32>
    %cst_16 = arith.constant dense<0.000000e+00> : vector<8xf32>
    %48 = vector.multi_reduction <add>, %47, %cst_16 [1] : vector<8x8xf32> to vector<8xf32>
    %49 = vector.shape_cast %48 : vector<8xf32> to vector<8x1xf32>
    %50 = tpu.reciprocal %49 {approx = true} : vector<8x1xf32> -> vector<8x1xf32>
    %51 = vector.broadcast %50 : vector<8x1xf32> to vector<8x8xf32>
    %52 = arith.mulf %47, %51 : vector<8x8xf32>
    %53 = arith.truncf %52 : vector<8x8xf32> to vector<8x8xbf16>
    %54 = vector.extract_strided_slice %10 {offsets = [0, 16], sizes = [8, 16], strides = [1, 1]} : vector<8x32xbf16> to vector<8x16xbf16>
    %cst_17 = arith.constant dense<0.000000e+00> : vector<8x16xf32>
    %55 = tpu.matmul %53, %54, %cst_17 {dimension_numbers = #tpu.dot_dimension_numbers<[1], [0], [0], [1], [0, 0, 1, 1], [], []>} : vector<8x8xbf16>, vector<8x16xbf16>, vector<8x16xf32> -> vector<8x16xf32>
    %56 = tpu.concatenate %36, %55 in 1 : vector<8x16xf32>, vector<8x16xf32> -> vector<8x32xf32>
    %57 = arith.truncf %56 : vector<8x32xf32> to vector<8x32xbf16>
    %c0_18 = arith.constant 0 : index
    %c0_19 = arith.constant 0 : index
    %58 = vector.load %arg5[%c0_18, %c0_19] : memref<32x32xbf16, #tpu.memory_space<vmem>>, vector<32x32xbf16>
    %cst_20 = arith.constant dense<0.000000e+00> : vector<8x32xf32>
    %59 = tpu.matmul %57, %58, %cst_20 {dimension_numbers = #tpu.dot_dimension_numbers<[1], [0], [0], [1], [0, 0, 1, 1], [], []>} : vector<8x32xbf16>, vector<32x32xbf16>, vector<8x32xf32> -> vector<8x32xf32>
    %c0_21 = arith.constant 0 : index
    %c0_22 = arith.constant 0 : index
    %60 = vector.load %arg6[%c0_21, %c0_22] : memref<1x32xf32, #tpu.memory_space<vmem>>, vector<1x32xf32>
    %61 = vector.broadcast %60 : vector<1x32xf32> to vector<8x32xf32>
    %62 = arith.addf %59, %61 : vector<8x32xf32>
    %63 = arith.addf %62, %0 : vector<8x32xf32>
    %c0_23 = arith.constant 0 : index
    %c0_24 = arith.constant 0 : index
    %64 = vector.load %arg7[%c0_23, %c0_24] : memref<1x32xf32, #tpu.memory_space<vmem>>, vector<1x32xf32>
    %c0_25 = arith.constant 0 : index
    %c0_26 = arith.constant 0 : index
    %65 = vector.load %arg8[%c0_25, %c0_26] : memref<1x32xf32, #tpu.memory_space<vmem>>, vector<1x32xf32>
    %cst_27 = arith.constant dense<0.000000e+00> : vector<8xf32>
    %66 = vector.multi_reduction <add>, %63, %cst_27 [1] : vector<8x32xf32> to vector<8xf32>
    %67 = vector.shape_cast %66 : vector<8xf32> to vector<8x1xf32>
    %cst_28 = arith.constant 3.200000e+01 : f32
    %68 = vector.broadcast %cst_28 : f32 to vector<8x1xf32>
    %69 = arith.divf %67, %68 : vector<8x1xf32>
    %70 = vector.broadcast %69 : vector<8x1xf32> to vector<8x32xf32>
    %71 = arith.subf %63, %70 : vector<8x32xf32>
    %72 = arith.mulf %71, %71 : vector<8x32xf32>
    %cst_29 = arith.constant dense<0.000000e+00> : vector<8xf32>
    %73 = vector.multi_reduction <add>, %72, %cst_29 [1] : vector<8x32xf32> to vector<8xf32>
    %74 = vector.shape_cast %73 : vector<8xf32> to vector<8x1xf32>
    %cst_30 = arith.constant 3.200000e+01 : f32
    %75 = vector.broadcast %cst_30 : f32 to vector<8x1xf32>
    %76 = arith.divf %74, %75 : vector<8x1xf32>
    %77 = vector.broadcast %69 : vector<8x1xf32> to vector<8x32xf32>
    %78 = arith.subf %63, %77 : vector<8x32xf32>
    %cst_31 = arith.constant 9.99999996E-13 : f32
    %79 = vector.broadcast %cst_31 : f32 to vector<8x1xf32>
    %80 = arith.addf %76, %79 : vector<8x1xf32>
    %81 = math.rsqrt %80 : vector<8x1xf32>
    %82 = vector.broadcast %81 : vector<8x1xf32> to vector<8x32xf32>
    %83 = arith.mulf %78, %82 : vector<8x32xf32>
    %84 = vector.broadcast %64 : vector<1x32xf32> to vector<8x32xf32>
    %85 = arith.mulf %83, %84 : vector<8x32xf32>
    %86 = vector.broadcast %65 : vector<1x32xf32> to vector<8x32xf32>
    %87 = arith.addf %85, %86 : vector<8x32xf32>
    %88 = arith.truncf %87 : vector<8x32xf32> to vector<8x32xbf16>
    %c0_32 = arith.constant 0 : index
    %c0_33 = arith.constant 0 : index
    %89 = vector.load %arg9[%c0_32, %c0_33] : memref<32x64xbf16, #tpu.memory_space<vmem>>, vector<32x64xbf16>
    %cst_34 = arith.constant dense<0.000000e+00> : vector<8x64xf32>
    %90 = tpu.matmul %88, %89, %cst_34 {dimension_numbers = #tpu.dot_dimension_numbers<[1], [0], [0], [1], [0, 0, 1, 1], [], []>} : vector<8x32xbf16>, vector<32x64xbf16>, vector<8x64xf32> -> vector<8x64xf32>
    %c0_35 = arith.constant 0 : index
    %c0_36 = arith.constant 0 : index
    %91 = vector.load %arg10[%c0_35, %c0_36] : memref<1x64xf32, #tpu.memory_space<vmem>>, vector<1x64xf32>
    %92 = vector.broadcast %91 : vector<1x64xf32> to vector<8x64xf32>
    %93 = arith.addf %90, %92 : vector<8x64xf32>
    %94 = arith.mulf %93, %93 : vector<8x64xf32>
    %95 = arith.mulf %93, %94 : vector<8x64xf32>
    %cst_37 = arith.constant 4.471500e-02 : f32
    %96 = vector.broadcast %cst_37 : f32 to vector<8x64xf32>
    %97 = arith.mulf %96, %95 : vector<8x64xf32>
    %98 = arith.addf %93, %97 : vector<8x64xf32>
    %cst_38 = arith.constant 0.797884583 : f32
    %99 = vector.broadcast %cst_38 : f32 to vector<8x64xf32>
    %100 = arith.mulf %99, %98 : vector<8x64xf32>
    %101 = math.tanh %100 : vector<8x64xf32>
    %cst_39 = arith.constant 1.000000e+00 : f32
    %102 = vector.broadcast %cst_39 : f32 to vector<8x64xf32>
    %103 = arith.addf %102, %101 : vector<8x64xf32>
    %cst_40 = arith.constant 5.000000e-01 : f32
    %104 = vector.broadcast %cst_40 : f32 to vector<8x64xf32>
    %105 = arith.mulf %104, %103 : vector<8x64xf32>
    %106 = arith.mulf %93, %105 : vector<8x64xf32>
    %107 = arith.truncf %106 : vector<8x64xf32> to vector<8x64xbf16>
    %c0_41 = arith.constant 0 : index
    %c0_42 = arith.constant 0 : index
    %108 = vector.load %arg11[%c0_41, %c0_42] : memref<64x32xbf16, #tpu.memory_space<vmem>>, vector<64x32xbf16>
    %cst_43 = arith.constant dense<0.000000e+00> : vector<8x32xf32>
    %109 = tpu.matmul %107, %108, %cst_43 {dimension_numbers = #tpu.dot_dimension_numbers<[1], [0], [0], [1], [0, 0, 1, 1], [], []>} : vector<8x64xbf16>, vector<64x32xbf16>, vector<8x32xf32> -> vector<8x32xf32>
    %c0_44 = arith.constant 0 : index
    %c0_45 = arith.constant 0 : index
    %110 = vector.load %arg12[%c0_44, %c0_45] : memref<1x32xf32, #tpu.memory_space<vmem>>, vector<1x32xf32>
    %111 = vector.broadcast %110 : vector<1x32xf32> to vector<8x32xf32>
    %112 = arith.addf %109, %111 : vector<8x32xf32>
    %113 = arith.addf %112, %87 : vector<8x32xf32>
    %c0_46 = arith.constant 0 : index
    %c0_47 = arith.constant 0 : index
    %114 = vector.load %arg13[%c0_46, %c0_47] : memref<1x32xf32, #tpu.memory_space<vmem>>, vector<1x32xf32>
    %c0_48 = arith.constant 0 : index
    %c0_49 = arith.constant 0 : index
    %115 = vector.load %arg14[%c0_48, %c0_49] : memref<1x32xf32, #tpu.memory_space<vmem>>, vector<1x32xf32>
    %cst_50 = arith.constant dense<0.000000e+00> : vector<8xf32>
    %116 = vector.multi_reduction <add>, %113, %cst_50 [1] : vector<8x32xf32> to vector<8xf32>
    %117 = vector.shape_cast %116 : vector<8xf32> to vector<8x1xf32>
    %cst_51 = arith.constant 3.200000e+01 : f32
    %118 = vector.broadcast %cst_51 : f32 to vector<8x1xf32>
    %119 = arith.divf %117, %118 : vector<8x1xf32>
    %120 = vector.broadcast %119 : vector<8x1xf32> to vector<8x32xf32>
    %121 = arith.subf %113, %120 : vector<8x32xf32>
    %122 = arith.mulf %121, %121 : vector<8x32xf32>
    %cst_52 = arith.constant dense<0.000000e+00> : vector<8xf32>
    %123 = vector.multi_reduction <add>, %122, %cst_52 [1] : vector<8x32xf32> to vector<8xf32>
    %124 = vector.shape_cast %123 : vector<8xf32> to vector<8x1xf32>
    %cst_53 = arith.constant 3.200000e+01 : f32
    %125 = vector.broadcast %cst_53 : f32 to vector<8x1xf32>
    %126 = arith.divf %124, %125 : vector<8x1xf32>
    %127 = vector.broadcast %119 : vector<8x1xf32> to vector<8x32xf32>
    %128 = arith.subf %113, %127 : vector<8x32xf32>
    %cst_54 = arith.constant 9.99999996E-13 : f32
    %129 = vector.broadcast %cst_54 : f32 to vector<8x1xf32>
    %130 = arith.addf %126, %129 : vector<8x1xf32>
    %131 = math.rsqrt %130 : vector<8x1xf32>
    %132 = vector.broadcast %131 : vector<8x1xf32> to vector<8x32xf32>
    %133 = arith.mulf %128, %132 : vector<8x32xf32>
    %134 = vector.broadcast %114 : vector<1x32xf32> to vector<8x32xf32>
    %135 = arith.mulf %133, %134 : vector<8x32xf32>
    %136 = vector.broadcast %115 : vector<1x32xf32> to vector<8x32xf32>
    %137 = arith.addf %135, %136 : vector<8x32xf32>
    %c0_55 = arith.constant 0 : index
    %c0_56 = arith.constant 0 : index
    %138 = vector.load %arg15[%c0_55, %c0_56] : memref<8x32xf32, #tpu.memory_space<vmem>>, vector<8x32xf32>
    tpu.vector_store %arg15[%c0_55, %c0_56], %137 {strides = array<i32>} : memref<8x32xf32, #tpu.memory_space<vmem>>, vector<8x32xf32>,
    return
  }
  func.func @transform_0(%arg0: i32) -> (i32, i32) {
    %c0_i32 = arith.constant 0 : i32
    %c0_i32_0 = arith.constant 0 : i32
    return %arg0, %c0_i32 : i32, i32
  }
  func.func @transform_1(%arg0: i32) -> (i32, i32, i32) {
    %c0_i32 = arith.constant 0 : i32
    %c0_i32_0 = arith.constant 0 : i32
    %c0_i32_1 = arith.constant 0 : i32
    return %arg0, %c0_i32, %c0_i32_0 : i32, i32, i32
  }
  func.func @transform_2(%arg0: i32) -> (i32, i32) {
    %c0_i32 = arith.constant 0 : i32
    %c0_i32_0 = arith.constant 0 : i32
    %c0_i32_1 = arith.constant 0 : i32
    return %c0_i32, %c0_i32_0 : i32, i32
  }
  func.func @transform_3(%arg0: i32) -> (i32, i32) {
    %c0_i32 = arith.constant 0 : i32
    %c0_i32_0 = arith.constant 0 : i32
    %c0_i32_1 = arith.constant 0 : i32
    return %c0_i32, %c0_i32_0 : i32, i32
  }
  func.func @transform_4(%arg0: i32) -> (i32, i32) {
    %c0_i32 = arith.constant 0 : i32
    %c0_i32_0 = arith.constant 0 : i32
    %c0_i32_1 = arith.constant 0 : i32
    return %c0_i32, %c0_i32_0 : i32, i32
  }
  func.func @transform_5(%arg0: i32) -> (i32, i32) {
    %c0_i32 = arith.constant 0 : i32
    %c0_i32_0 = arith.constant 0 : i32
    %c0_i32_1 = arith.constant 0 : i32
    return %c0_i32, %c0_i32_0 : i32, i32
  }
  func.func @transform_6(%arg0: i32) -> (i32, i32) {
    %c0_i32 = arith.constant 0 : i32
    %c0_i32_0 = arith.constant 0 : i32
    %c0_i32_1 = arith.constant 0 : i32
    return %c0_i32, %c0_i32_0 : i32, i32
  }
  func.func @transform_7(%arg0: i32) -> (i32, i32) {
    %c0_i32 = arith.constant 0 : i32
    %c0_i32_0 = arith.constant 0 : i32
    %c0_i32_1 = arith.constant 0 : i32
    return %c0_i32, %c0_i32_0 : i32, i32
  }
  func.func @transform_8(%arg0: i32) -> (i32, i32) {
    %c0_i32 = arith.constant 0 : i32
    %c0_i32_0 = arith.constant 0 : i32
    %c0_i32_1 = arith.constant 0 : i32
    return %c0_i32, %c0_i32_0 : i32, i32
  }
  func.func @transform_9(%arg0: i32) -> (i32, i32) {
    %c0_i32 = arith.constant 0 : i32
    %c0_i32_0 = arith.constant 0 : i32
    %c0_i32_1 = arith.constant 0 : i32
    return %c0_i32, %c0_i32_0 : i32, i32
  }
  func.func @transform_10(%arg0: i32) -> (i32, i32) {
    %c0_i32 = arith.constant 0 : i32
    %c0_i32_0 = arith.constant 0 : i32
    %c0_i32_1 = arith.constant 0 : i32
    return %c0_i32, %c0_i32_0 : i32, i32
  }
  func.func @transform_11(%arg0: i32) -> (i32, i32) {
    %c0_i32 = arith.constant 0 : i32
    %c0_i32_0 = arith.constant 0 : i32
    %c0_i32_1 = arith.constant 0 : i32
    return %c0_i32, %c0_i32_0 : i32, i32
  }
  func.func @transform_12(%arg0: i32) -> (i32, i32) {
    %c0_i32 = arith.constant 0 : i32
    %c0_i32_0 = arith.constant 0 : i32
    %c0_i32_1 = arith.constant 0 : i32
    return %c0_i32, %c0_i32_0 : i32, i32
  }
  func.func @transform_13(%arg0: i32) -> (i32, i32) {
    %c0_i32 = arith.constant 0 : i32
    %c0_i32_0 = arith.constant 0 : i32
    %c0_i32_1 = arith.constant 0 : i32
    return %c0_i32, %c0_i32_0 : i32, i32
  }
  func.func @transform_14(%arg0: i32) -> (i32, i32) {
    %c0_i32 = arith.constant 0 : i32
    %c0_i32_0 = arith.constant 0 : i32
    return %arg0, %c0_i32 : i32, i32
  }
}

</mosaic_0001>

<llo_original>
// kernel: sentence_classification_forward.4
$region0: #{sentence_classification_forward.4}
  #allocation0 [shape = 'u32[]', space=smem, size = 0x4, offset = 0x4, fixed_abs, tag = 'smem constant byte address 0x4 - core index']
  #allocation1 [shape = 'u32[144,128]{1,0:T(1,128)}', space=vmem, size = 0x12000, scoped, tag = 'internal scratch']
  %s0 = inlined_call_operand.vmem [shape: f32[16,32], index: 0, kind: input, shape index: {}]
  %s1 = inlined_call_operand.vmem [shape: f32[1,32], index: 1, kind: input, shape index: {}]
  %s2 = inlined_call_operand.vmem [shape: f32[1,32], index: 2, kind: input, shape index: {}]
  %s3 = inlined_call_operand.vmem [shape: f32[16,32], index: 3, kind: output, shape index: {}]
  %s4 = sld [smem:[#allocation0]]
  $region22: #{sentence_classification_forward.4} parent=0
    _
  %s6 = ssub.s32 1, %s4
  %s7 = scalar_select 0, %s6, %s4
  // Predicated region
  $region2: #{sentence_classification_forward.4} parent=0 // pred_check
    _
  $region3: #{sentence_classification_forward.4} parent=0 // pred_check_branch
    %9 = sbr.rel (0) target = $region5
  $region4: #{sentence_classification_forward.4} parent=0 // pred_region
    _
  $region5: #{sentence_classification_forward.4} parent=0 // pred_fallthru
    _
  // Predicated region
  $region6: #{sentence_classification_forward.4} parent=0 // pred_check
    _
  $region7: #{sentence_classification_forward.4} parent=0 // pred_check_branch
    %11 = sbr.rel (0) target = $region9
  $region8: #{sentence_classification_forward.4} parent=0 // pred_region
    _
  $region9: #{sentence_classification_forward.4} parent=0 // pred_fallthru
    _
  // Predicated region
  $region10: #{sentence_classification_forward.4} parent=0 // pred_check
    _
  $region11: #{sentence_classification_forward.4} parent=0 // pred_check_branch
    %13 = sbr.rel (0) target = $region13
  $region12: #{sentence_classification_forward.4} parent=0 // pred_region
    _
  $region13: #{sentence_classification_forward.4} parent=0 // pred_fallthru
    _
  %v14 = vld [vmem:[%s0] sm:$0xff]
  %v15 = vld [vmem:[%s0 + $0x8] sm:$0xff]
  %v16 = vld [vmem:[%s1] sm:$0x1]
  %v17 = vld [vmem:[%s2] sm:$0x1]
  %vm18 = vcmask 261120
  %v19 = vsel %vm18, %v14, 0.0
  %20 = vadd.xlane.f32.xlu0 %v19
  %v21 = vpop.xlane.xlu0 %20
  %v22 = vsel %vm18, %v15, 0.0
  %23 = vadd.xlane.f32.xlu0 %v22
  %v24 = vpop.xlane.xlu0 %23
  %v25 = vrcp.pop 32.0
  %v26 = vmul.f32 %v21, %v25
  %v27 = vmul.f32 %v24, %v25
  %v28 = vsub.f32 %v14, %v26
  %v29 = vsub.f32 %v15, %v27
  %v30 = vmul.f32 %v28, %v28
  %v31 = vmul.f32 %v29, %v29
  %v32 = vsel %vm18, %v30, 0.0
  %33 = vadd.xlane.f32.xlu0 %v32
  %v34 = vpop.xlane.xlu0 %33
  %v35 = vsel %vm18, %v31, 0.0
  %36 = vadd.xlane.f32.xlu0 %v35
  %v37 = vpop.xlane.xlu0 %36
  %v38 = vmul.f32 %v34, %v25
  %v39 = vmul.f32 %v37, %v25
  %v40 = vadd.f32 %v38, 1e-12
  %v41 = vadd.f32 %v39, 1e-12
  %v42 = vrsqrt.pop %v40
  %v43 = vrsqrt.pop %v41
  %v44 = vmul.f32 %v28, %v42
  %v45 = vmul.f32 %v29, %v43
  %v47 = vlaneseq
  %v48 = vshrl.u32 %v47, 7
  %v49 = vsub.s32 0, %v48
  %v50 = vrot.slane %v16, %v49
  %v52 = vmul.f32 %v44, %v50
  %v53 = vmul.f32 %v45, %v50
  %v55 = vlaneseq
  %v56 = vshrl.u32 %v55, 7
  %v57 = vsub.s32 0, %v56
  %v58 = vrot.slane %v17, %v57
  %v60 = vadd.f32 %v52, %v58
  %v61 = vadd.f32 %v53, %v58
  %62 = vst.msk [vmem:[%s3] sm:$0xff] %vm18, %v60
  %63 = vst.msk [vmem:[%s3 + $0x8] sm:$0xff] %vm18, %v61
  // Predicated region
  $region14: #{sentence_classification_forward.4} parent=0 // pred_check
    _
  $region15: #{sentence_classification_forward.4} parent=0 // pred_check_branch
    %65 = sbr.rel (0) target = $region17
  $region16: #{sentence_classification_forward.4} parent=0 // pred_region
    _
  $region17: #{sentence_classification_forward.4} parent=0 // pred_fallthru
    _
  // Predicated region
  $region18: #{sentence_classification_forward.4} parent=0 // pred_check
    _
  $region19: #{sentence_classification_forward.4} parent=0 // pred_check_branch
    %67 = sbr.rel (0) target = $region21
  $region20: #{sentence_classification_forward.4} parent=0 // pred_region
    _
  $region21: #{sentence_classification_forward.4} parent=0 // pred_fallthru
    _

// kernel: sentence_classification_forward.7
$region0: #{sentence_classification_forward.7}
  #allocation0 [shape = 'u32[]', space=smem, size = 0x4, offset = 0x4, fixed_abs, tag = 'smem constant byte address 0x4 - core index']
  #allocation1 [shape = 'u32[144,128]{1,0:T(1,128)}', space=vmem, size = 0x12000, scoped, tag = 'internal scratch']
  %s0 = inlined_call_operand.vmem [shape: f32[16,32], index: 0, kind: input, shape index: {}]
  %s1 = inlined_call_operand.vmem [shape: bf16[32,32], index: 1, kind: input, shape index: {}]
  %s2 = inlined_call_operand.vmem [shape: f32[1,32], index: 2, kind: input, shape index: {}]
  %s3 = inlined_call_operand.vmem [shape: bf16[32,5], index: 3, kind: input, shape index: {}]
  %s4 = inlined_call_operand.vmem [shape: f32[1,5], index: 4, kind: input, shape index: {}]
  %s5 = inlined_call_operand.vmem [shape: f32[2,5], index: 5, kind: input, shape index: {}]
  %s6 = inlined_call_operand.hbm [shape: f32[1,1], index: 6, kind: output, shape index: {}]
  %s7 = sld [smem:[#allocation0]]
  $region34: #{sentence_classification_forward.7} parent=0
    _
  %s9 = ssub.s32 1, %s7
  %s10 = scalar_select 0, %s9, %s7
  $region1: #{sentence_classification_forward.7} parent=0
    #allocation2 [shape = 'u8[512]{0}', space=smem, size = 0x200, scoped, tag = 'output window, operand 0, single buffered']
    #allocation3 [shape = 's32[1]{0}', space=sflag, size = 0x4, scoped, tag = 'scoped memory for sentence_classification_forward.7']
    %11 = vsyncpa [#allocation3], 0
    // Predicated region
    $region2: #{sentence_classification_forward.7} parent=1 // pred_check
      _
    $region3: #{sentence_classification_forward.7} parent=1 // pred_check_branch
      %13 = sbr.rel (0) target = $region5
    $region4: #{sentence_classification_forward.7} parent=1 // pred_region
      _
    $region5: #{sentence_classification_forward.7} parent=1 // pred_fallthru
      _
    // Predicated region
    $region6: #{sentence_classification_forward.7} parent=1 // pred_check
      _
    $region7: #{sentence_classification_forward.7} parent=1 // pred_check_branch
      %15 = sbr.rel (0) target = $region9
    $region8: #{sentence_classification_forward.7} parent=1 // pred_region
      _
    $region9: #{sentence_classification_forward.7} parent=1 // pred_fallthru
      _
    // Predicated region
    $region10: #{sentence_classification_forward.7} parent=1 // pred_check
      _
    $region11: #{sentence_classification_forward.7} parent=1 // pred_check_branch
      %17 = sbr.rel (0) target = $region13
    $region12: #{sentence_classification_forward.7} parent=1 // pred_region
      _
    $region13: #{sentence_classification_forward.7} parent=1 // pred_fallthru
      _
    // Predicated region
    $region14: #{sentence_classification_forward.7} parent=1 // pred_check
      _
    $region15: #{sentence_classification_forward.7} parent=1 // pred_check_branch
      %19 = sbr.rel (0) target = $region17
    $region16: #{sentence_classification_forward.7} parent=1 // pred_region
      _
    $region17: #{sentence_classification_forward.7} parent=1 // pred_fallthru
      _
    // Predicated region
    $region18: #{sentence_classification_forward.7} parent=1 // pred_check
      _
    $region19: #{sentence_classification_forward.7} parent=1 // pred_check_branch
      %21 = sbr.rel (0) target = $region21
    $region20: #{sentence_classification_forward.7} parent=1 // pred_region
      _
    $region21: #{sentence_classification_forward.7} parent=1 // pred_fallthru
      _
    // Predicated region
    $region22: #{sentence_classification_forward.7} parent=1 // pred_check
      _
    $region23: #{sentence_classification_forward.7} parent=1 // pred_check_branch
      %23 = sbr.rel (0) target = $region25
    $region24: #{sentence_classification_forward.7} parent=1 // pred_region
      _
    $region25: #{sentence_classification_forward.7} parent=1 // pred_fallthru
      _
    %v25 = vld [vmem:[%s0] ss:$8 sm:$0x3]
    %v26 = vpack.c.bf16 %v25, %v25
    %v27 = vld [vmem:[%s1] sm:$0xf]
    %v28 = vld [vmem:[%s1 + $0x4] sm:$0xf]
    %v29 = vld [vmem:[%s1 + $0x8] sm:$0xf]
    %v30 = vld [vmem:[%s1 + $0xc] sm:$0xf]
    %v31 = vld [vmem:[%s2] sm:$0x1]
    %v33 = vlaneseq
    %v34 = vshrl.u32 %v33, 7
    %v35 = vsub.s32 0, %v34
    %v36 = vrot.slane %v31, %v35
    %v42 = vunpack.c.l.b16 %v27
    %v43 = vunpack.c.l.b16 %v28
    %v44 = vunpack.c.l.b16 %v29
    %v45 = vunpack.c.l.b16 %v30
    %v46 = vpack.c.b16 %v43, %v42
    %v47 = vpack.c.b16 %v45, %v44
    %vm50 = vcmask 261120
    %v52 = vsel %vm50, %v26, 0
    %54 = vmatprep.subr.bf16.mxu0 0
    %55 = vmatpush1.bf16.msra.mxu0 0
    %56 = vmatprep.subr.bf16.mxu0 0
    %57 = vmatpush1.bf16.msra.mxu0 0
    %58 = vmatprep.subr.bf16.mxu0 0
    %59 = vmatpush1.bf16.msra.mxu0 0
    %60 = vmatprep.subr.bf16.mxu0 0
    %61 = vmatpush1.bf16.msra.mxu0 0
    %62 = vmatprep.subr.bf16.mxu0 0
    %63 = vmatpush1.bf16.msra.mxu0 0
    %64 = vmatprep.subr.bf16.mxu0 0
    %65 = vmatpush1.bf16.msra.mxu0 0
    %66 = vmatprep.subr.bf16.mxu0 0
    %67 = vmatpush1.bf16.msra.mxu0 %v47
    %68 = vmatprep.subr.bf16.mxu0 0
    %69 = vmatpush1.bf16.msra.mxu0 %v46
    %70 = vmatprep.subr.bf16.mxu0 0
    %71 = vmatpush2.bf16.msra.mxu0 0
    %72 = vmatprep.subr.bf16.mxu0 0
    %73 = vmatpush2.bf16.msra.mxu0 0
    %74 = vmatprep.subr.bf16.mxu0 0
    %75 = vmatpush2.bf16.msra.mxu0 0
    %76 = vmatprep.subr.bf16.mxu0 0
    %77 = vmatpush2.bf16.msra.mxu0 0
    %78 = vmatprep.subr.bf16.mxu0 0
    %79 = vmatpush2.bf16.msra.mxu0 0
    %80 = vmatprep.subr.bf16.mxu0 0
    %81 = vmatpush2.bf16.msra.mxu0 0
    %82 = vmatprep.subr.bf16.mxu0 0
    %83 = vmatpush2.bf16.msra.mxu0 0
    %84 = vmatprep.subr.bf16.mxu0 0
    %85 = vmatpush2.bf16.msra.mxu0 0
    %86 = vmatprep.mubr.bf16.mxu0 0
    %87 = vmatmul.mubr.bf16.gmra.mxu0 %v52
    %v88 = vpop.f32.mrf.mxu0
    %v89 = vadd.f32 %v36, %v88
    %v90 = vpop.f32.mrf.mxu0
    %v91 = vpop.f32.mrf.mxu0
    %v92 = vpop.f32.mrf.mxu0
    %93 = vdwg.mxu0
    %v94 = vtanh.pop %v89
    %v95 = vpack.c.bf16 %v94, %v94
    %v96 = vld [vmem:[%s3] sm:$0xf]
    %v97 = vld [vmem:[%s3 + $0x4] sm:$0xf]
    %v98 = vld [vmem:[%s3 + $0x8] sm:$0xf]
    %v99 = vld [vmem:[%s3 + $0xc] sm:$0xf]
    %v100 = vld [vmem:[%s4] sm:$0x1]
    %v102 = vlaneseq
    %v103 = vshrl.u32 %v102, 7
    %v104 = vsub.s32 0, %v103
    %v105 = vrot.slane %v100, %v104
    %v111 = vunpack.c.l.b16 %v96
    %v112 = vunpack.c.l.b16 %v97
    %v113 = vunpack.c.l.b16 %v98
    %v114 = vunpack.c.l.b16 %v99
    %v115 = vpack.c.b16 %v112, %v111
    %v116 = vpack.c.b16 %v114, %v113
    %v120 = vsel %vm50, %v95, 0
    %122 = vmatprep.subr.bf16.mxu0 0
    %123 = vmatpush1.bf16.msra.mxu0 0
    %124 = vmatprep.subr.bf16.mxu0 0
    %125 = vmatpush1.bf16.msra.mxu0 0
    %126 = vmatprep.subr.bf16.mxu0 0
    %127 = vmatpush1.bf16.msra.mxu0 0
    %128 = vmatprep.subr.bf16.mxu0 0
    %129 = vmatpush1.bf16.msra.mxu0 0
    %130 = vmatprep.subr.bf16.mxu0 0
    %131 = vmatpush1.bf16.msra.mxu0 0
    %132 = vmatprep.subr.bf16.mxu0 0
    %133 = vmatpush1.bf16.msra.mxu0 0
    %134 = vmatprep.subr.bf16.mxu0 0
    %135 = vmatpush1.bf16.msra.mxu0 %v116
    %136 = vmatprep.subr.bf16.mxu0 0
    %137 = vmatpush1.bf16.msra.mxu0 %v115
    %138 = vmatprep.subr.bf16.mxu0 0
    %139 = vmatpush2.bf16.msra.mxu0 0
    %140 = vmatprep.subr.bf16.mxu0 0
    %141 = vmatpush2.bf16.msra.mxu0 0
    %142 = vmatprep.subr.bf16.mxu0 0
    %143 = vmatpush2.bf16.msra.mxu0 0
    %144 = vmatprep.subr.bf16.mxu0 0
    %145 = vmatpush2.bf16.msra.mxu0 0
    %146 = vmatprep.subr.bf16.mxu0 0
    %147 = vmatpush2.bf16.msra.mxu0 0
    %148 = vmatprep.subr.bf16.mxu0 0
    %149 = vmatpush2.bf16.msra.mxu0 0
    %150 = vmatprep.subr.bf16.mxu0 0
    %151 = vmatpush2.bf16.msra.mxu0 0
    %152 = vmatprep.subr.bf16.mxu0 0
    %153 = vmatpush2.bf16.msra.mxu0 0
    %154 = vmatprep.mubr.bf16.mxu0 0
    %155 = vmatmul.mubr.bf16.gmra.mxu0 %v120
    %v156 = vpop.f32.mrf.mxu0
    %v157 = vadd.f32 %v105, %v156
    %v158 = vpop.f32.mrf.mxu0
    %v159 = vpop.f32.mrf.mxu0
    %v160 = vpop.f32.mrf.mxu0
    %161 = vdwg.mxu0
    %v162 = vld [vmem:[%s5] sm:$0x3]
    %v163 = vand.u32 2147483647, %v157
    %v164 = vsub.f32 0.0, %v163
    %v165 = vmul.f32 %v164, 1.442695
    %v166 = vpow.pop %v165
    %v167 = vadd.f32 %v166, 1.0
    %v168 = vlog2.pop %v167
    %v169 = vmul.f32 %v168, 0.6931472
    %v170 = vmul.f32 -0.5, %v166
    %v171 = vadd.f32 %v170, 1.0
    %v172 = vmul.f32 %v171, %v166
    %v173 = vand.u32 2147483647, %v166
    %vm174 = vcmp.lt.f32.partialorder %v173, 0.0004427343
    %v175 = vsel %vm174, %v172, %v169
    %v176 = vsub.f32 0.0, %v157
    %v177 = vmax.f32 %v176, 0.0
    %v178 = vadd.f32 %v177, %v175
    %v179 = vsub.f32 0.0, %v178
    %v180 = vmax.f32 %v157, 0.0
    %v181 = vadd.f32 %v180, %v175
    %v182 = vsub.f32 0.0, %v181
    %v183 = vmul.f32 %v162, %v179
    %v184 = vsub.f32 1.0, %v162
    %v185 = vmul.f32 %v184, %v182
    %v186 = vadd.f32 %v183, %v185
    %v187 = vsub.f32 0.0, %v186
    %vm188 = vcmask 33792
    %v189 = vsel %vm188, %v187, 0.0
    %190 = vadd.xlane.f32.xlu0 %v189
    %v191 = vpop.xlane.xlu0 %190
    %v192 = vrot.slane %v191, 4
    %v193 = vadd.f32 %v191, %v192
    %v194 = vrot.slane %v193, 2
    %v195 = vadd.f32 %v193, %v194
    %v196 = vrot.slane %v195, 1
    %v197 = vadd.f32 %v195, %v196
    %s198 = vtos %v197
    %v199 = vrcp.pop 10.0
    %s200 = vtos %v199
    %s201 = smul.f32 %s198, %s200
    %s202 = scalar_lea.smem [#allocation2], 0
    %203 = sst [smem:[%s202]] %s201
    // Predicated region
    $region26: #{sentence_classification_forward.7} parent=1 // pred_check
      _
    $region27: #{sentence_classification_forward.7} parent=1 // pred_check_branch
      %205 = sbr.rel (0) target = $region29
    $region28: #{sentence_classification_forward.7} parent=1 // pred_region
      %s207 = ssub.s32 16, 16
      %208 = vsyncadd [#allocation3], %s207
      %211 = dma.smem_to_hbm [#allocation2], 16, %s6, [#allocation3]
    $region29: #{sentence_classification_forward.7} parent=1 // pred_fallthru
      _
    // Predicated region
    $region30: #{sentence_classification_forward.7} parent=1 // pred_check
      _
    $region31: #{sentence_classification_forward.7} parent=1 // pred_check_branch
      %213 = sbr.rel (0) target = $region33
    $region32: #{sentence_classification_forward.7} parent=1 // pred_region
      %214 = dma.done [#allocation3], 16
    $region33: #{sentence_classification_forward.7} parent=1 // pred_fallthru
      _
    %215 = sfence
    %216 = vsyncpa [#allocation3], 1

// kernel: sentence_classification_forward.5
$region0: #{sentence_classification_forward.5}
  #allocation0 [shape = 'u32[]', space=smem, size = 0x4, offset = 0x4, fixed_abs, tag = 'smem constant byte address 0x4 - core index']
  #allocation1 [shape = 'u32[144,128]{1,0:T(1,128)}', space=vmem, size = 0x12000, scoped, tag = 'internal scratch']
  %s0 = inlined_call_operand.vmem [shape: f32[16,32], index: 0, kind: input, shape index: {}, may-alias: {0,14}]
  %s1 = inlined_call_operand.vmem [shape: f32[2,1,8], index: 1, kind: input, shape index: {}]
  %s2 = inlined_call_operand.vmem [shape: bf16[32,96], index: 2, kind: input, shape index: {}]
  %s3 = inlined_call_operand.vmem [shape: f32[1,96], index: 3, kind: input, shape index: {}]
  %s4 = inlined_call_operand.vmem [shape: bf16[32,32], index: 4, kind: input, shape index: {}]
  %s5 = inlined_call_operand.vmem [shape: f32[1,32], index: 5, kind: input, shape index: {}]
  %s6 = inlined_call_operand.vmem [shape: f32[1,32], index: 6, kind: input, shape index: {}]
  %s7 = inlined_call_operand.vmem [shape: f32[1,32], index: 7, kind: input, shape index: {}]
  %s8 = inlined_call_operand.vmem [shape: bf16[32,64], index: 8, kind: input, shape index: {}]
  %s9 = inlined_call_operand.vmem [shape: f32[1,64], index: 9, kind: input, shape index: {}]
  %s10 = inlined_call_operand.vmem [shape: bf16[64,32], index: 10, kind: input, shape index: {}]
  %s11 = inlined_call_operand.vmem [shape: f32[1,32], index: 11, kind: input, shape index: {}]
  %s12 = inlined_call_operand.vmem [shape: f32[1,32], index: 12, kind: input, shape index: {}]
  %s13 = inlined_call_operand.vmem [shape: f32[1,32], index: 13, kind: input, shape index: {}]
  %s14 = inlined_call_operand.vmem [shape: f32[16,32], index: 14, kind: output, shape index: {}, may-alias: {0,14}]
  %s15 = sld [smem:[#allocation0]]
  $region89: #{sentence_classification_forward.5} parent=0
    _
  %s17 = ssub.s32 1, %s15
  %s18 = scalar_select 0, %s17, %s15
  loop: start=0, step=1, limit=4
  $region2: #{sentence_classification_forward.5} parent=0 // loop_pre_header
    _
  $region3: #{sentence_classification_forward.5} parent=0 // loop_header
    %s20 = sphi 0, %s24
    %p21 = scmp.ge.s32.totalorder %s20, 4
    %s30 = sphi 0, %s32
    %s33 = sphi 0, %s30
    %s34 = sphi 0, %s33
    %s50 = sphi 0, %s34
    %s56 = sphi 0, %s58
    %s59 = sphi 0, %s56
    %s60 = sphi 0, %s59
    %s76 = sphi 0, %s60
    %s80 = sphi 0, %s80
    %s82 = sphi 0, %s80
    %s83 = sphi 0, %s82
    %s97 = sphi 0, %s83
    %s101 = sphi 0, %s101
    %s103 = sphi 0, %s101
    %s104 = sphi 0, %s103
    %s118 = sphi 0, %s104
    %s122 = sphi 0, %s122
    %s124 = sphi 0, %s122
    %s125 = sphi 0, %s124
    %s139 = sphi 0, %s125
    %s143 = sphi 0, %s143
    %s145 = sphi 0, %s143
    %s146 = sphi 0, %s145
    %s160 = sphi 0, %s146
    %s164 = sphi 0, %s164
    %s166 = sphi 0, %s164
    %s167 = sphi 0, %s166
    %s181 = sphi 0, %s167
    %s185 = sphi 0, %s185
    %s187 = sphi 0, %s185
    %s188 = sphi 0, %s187
    %s202 = sphi 0, %s188
    %s206 = sphi 0, %s206
    %s208 = sphi 0, %s206
    %s209 = sphi 0, %s208
    %s223 = sphi 0, %s209
    %s227 = sphi 0, %s227
    %s229 = sphi 0, %s227
    %s230 = sphi 0, %s229
    %s244 = sphi 0, %s230
    %s248 = sphi 0, %s248
    %s250 = sphi 0, %s248
    %s251 = sphi 0, %s250
    %s265 = sphi 0, %s251
    %s269 = sphi 0, %s269
    %s271 = sphi 0, %s269
    %s272 = sphi 0, %s271
    %s286 = sphi 0, %s272
    %s290 = sphi 0, %s290
    %s292 = sphi 0, %s290
    %s293 = sphi 0, %s292
    %s307 = sphi 0, %s293
    %s311 = sphi 0, %s311
    %s313 = sphi 0, %s311
    %s314 = sphi 0, %s313
    %s328 = sphi 0, %s314
    %s334 = sphi 0, %s336
    %s337 = sphi 0, %s334
    %s338 = sphi 0, %s337
    %s354 = sphi 0, %s338
  $region4: #{sentence_classification_forward.5} parent=0 // loop_header_branch
    %23 = sbr.rel (%p21) target = $region8
  $region5: #{sentence_classification_forward.5} parent=0 // loop_body
    %s25 = ssub.s32 %s20, 1
    %s26 = ssub.s32 %s20, 2
    %s27 = sadd.s32 %s20, 1
    %s28 = ssub.s32 %s20, %s27
    %p29 = scmp.eq.s32.totalorder %s28, 0
    %s31 = sadd.s32 %s30, 1
    %s32 = scalar_select %p29, %s30, %s31
    %p35 = pneg %p29
    %p36 = scmp.eq.s32.totalorder %s20, 1
    %p37 = por %p35, %p36
    %p38 = scmp.ne.s32.totalorder %s30, %s33
    %p39 = scmp.eq.s32.totalorder %s20, 0
    %p40 = por %p38, %p39
    %p41 = scmp.ne.s32.totalorder %s30, %s33
    %p42 = scmp.eq.s32.totalorder %s25, 1
    %p43 = por %p41, %p42
    %p44 = scmp.ne.s32.totalorder %s33, %s34
    %p45 = scmp.eq.s32.totalorder %s25, 0
    %p46 = por %p44, %p45
    %p47 = scmp.ne.s32.totalorder %s33, %s34
    %p48 = scmp.eq.s32.totalorder %s26, 1
    %p49 = por %p47, %p48
    %p51 = scmp.ne.s32.totalorder %s34, %s50
    %p52 = scmp.eq.s32.totalorder %s26, 0
    %p53 = por %p51, %p52
    %s54 = ssub.s32 %s20, %s27
    %p55 = scmp.eq.s32.totalorder %s54, 0
    %s57 = sadd.s32 %s56, 1
    %s58 = scalar_select %p55, %s56, %s57
    %p61 = pneg %p55
    %p62 = scmp.eq.s32.totalorder %s20, 1
    %p63 = por %p61, %p62
    %p64 = scmp.ne.s32.totalorder %s56, %s59
    %p65 = scmp.eq.s32.totalorder %s20, 0
    %p66 = por %p64, %p65
    %p67 = scmp.ne.s32.totalorder %s56, %s59
    %p68 = scmp.eq.s32.totalorder %s25, 1
    %p69 = por %p67, %p68
    %p70 = scmp.ne.s32.totalorder %s59, %s60
    %p71 = scmp.eq.s32.totalorder %s25, 0
    %p72 = por %p70, %p71
    %p73 = scmp.ne.s32.totalorder %s59, %s60
    %p74 = scmp.eq.s32.totalorder %s26, 1
    %p75 = por %p73, %p74
    %p77 = scmp.ne.s32.totalorder %s60, %s76
    %p78 = scmp.eq.s32.totalorder %s26, 0
    %p79 = por %p77, %p78
    %s81 = sadd.s32 %s80, 1
    %p84 = scmp.eq.s32.totalorder %s20, 1
    %p85 = scmp.ne.s32.totalorder %s80, %s82
    %p86 = scmp.eq.s32.totalorder %s20, 0
    %p87 = por %p85, %p86
    %p88 = scmp.ne.s32.totalorder %s80, %s82
    %p89 = scmp.eq.s32.totalorder %s25, 1
    %p90 = por %p88, %p89
    %p91 = scmp.ne.s32.totalorder %s82, %s83
    %p92 = scmp.eq.s32.totalorder %s25, 0
    %p93 = por %p91, %p92
    %p94 = scmp.ne.s32.totalorder %s82, %s83
    %p95 = scmp.eq.s32.totalorder %s26, 1
    %p96 = por %p94, %p95
    %p98 = scmp.ne.s32.totalorder %s83, %s97
    %p99 = scmp.eq.s32.totalorder %s26, 0
    %p100 = por %p98, %p99
    %s102 = sadd.s32 %s101, 1
    %p105 = scmp.eq.s32.totalorder %s20, 1
    %p106 = scmp.ne.s32.totalorder %s101, %s103
    %p107 = scmp.eq.s32.totalorder %s20, 0
    %p108 = por %p106, %p107
    %p109 = scmp.ne.s32.totalorder %s101, %s103
    %p110 = scmp.eq.s32.totalorder %s25, 1
    %p111 = por %p109, %p110
    %p112 = scmp.ne.s32.totalorder %s103, %s104
    %p113 = scmp.eq.s32.totalorder %s25, 0
    %p114 = por %p112, %p113
    %p115 = scmp.ne.s32.totalorder %s103, %s104
    %p116 = scmp.eq.s32.totalorder %s26, 1
    %p117 = por %p115, %p116
    %p119 = scmp.ne.s32.totalorder %s104, %s118
    %p120 = scmp.eq.s32.totalorder %s26, 0
    %p121 = por %p119, %p120
    %s123 = sadd.s32 %s122, 1
    %p126 = scmp.eq.s32.totalorder %s20, 1
    %p127 = scmp.ne.s32.totalorder %s122, %s124
    %p128 = scmp.eq.s32.totalorder %s20, 0
    %p129 = por %p127, %p128
    %p130 = scmp.ne.s32.totalorder %s122, %s124
    %p131 = scmp.eq.s32.totalorder %s25, 1
    %p132 = por %p130, %p131
    %p133 = scmp.ne.s32.totalorder %s124, %s125
    %p134 = scmp.eq.s32.totalorder %s25, 0
    %p135 = por %p133, %p134
    %p136 = scmp.ne.s32.totalorder %s124, %s125
    %p137 = scmp.eq.s32.totalorder %s26, 1
    %p138 = por %p136, %p137
    %p140 = scmp.ne.s32.totalorder %s125, %s139
    %p141 = scmp.eq.s32.totalorder %s26, 0
    %p142 = por %p140, %p141
    %s144 = sadd.s32 %s143, 1
    %p147 = scmp.eq.s32.totalorder %s20, 1
    %p148 = scmp.ne.s32.totalorder %s143, %s145
    %p149 = scmp.eq.s32.totalorder %s20, 0
    %p150 = por %p148, %p149
    %p151 = scmp.ne.s32.totalorder %s143, %s145
    %p152 = scmp.eq.s32.totalorder %s25, 1
    %p153 = por %p151, %p152
    %p154 = scmp.ne.s32.totalorder %s145, %s146
    %p155 = scmp.eq.s32.totalorder %s25, 0
    %p156 = por %p154, %p155
    %p157 = scmp.ne.s32.totalorder %s145, %s146
    %p158 = scmp.eq.s32.totalorder %s26, 1
    %p159 = por %p157, %p158
    %p161 = scmp.ne.s32.totalorder %s146, %s160
    %p162 = scmp.eq.s32.totalorder %s26, 0
    %p163 = por %p161, %p162
    %s165 = sadd.s32 %s164, 1
    %p168 = scmp.eq.s32.totalorder %s20, 1
    %p169 = scmp.ne.s32.totalorder %s164, %s166
    %p170 = scmp.eq.s32.totalorder %s20, 0
    %p171 = por %p169, %p170
    %p172 = scmp.ne.s32.totalorder %s164, %s166
    %p173 = scmp.eq.s32.totalorder %s25, 1
    %p174 = por %p172, %p173
    %p175 = scmp.ne.s32.totalorder %s166, %s167
    %p176 = scmp.eq.s32.totalorder %s25, 0
    %p177 = por %p175, %p176
    %p178 = scmp.ne.s32.totalorder %s166, %s167
    %p179 = scmp.eq.s32.totalorder %s26, 1
    %p180 = por %p178, %p179
    %p182 = scmp.ne.s32.totalorder %s167, %s181
    %p183 = scmp.eq.s32.totalorder %s26, 0
    %p184 = por %p182, %p183
    %s186 = sadd.s32 %s185, 1
    %p189 = scmp.eq.s32.totalorder %s20, 1
    %p190 = scmp.ne.s32.totalorder %s185, %s187
    %p191 = scmp.eq.s32.totalorder %s20, 0
    %p192 = por %p190, %p191
    %p193 = scmp.ne.s32.totalorder %s185, %s187
    %p194 = scmp.eq.s32.totalorder %s25, 1
    %p195 = por %p193, %p194
    %p196 = scmp.ne.s32.totalorder %s187, %s188
    %p197 = scmp.eq.s32.totalorder %s25, 0
    %p198 = por %p196, %p197
    %p199 = scmp.ne.s32.totalorder %s187, %s188
    %p200 = scmp.eq.s32.totalorder %s26, 1
    %p201 = por %p199, %p200
    %p203 = scmp.ne.s32.totalorder %s188, %s202
    %p204 = scmp.eq.s32.totalorder %s26, 0
    %p205 = por %p203, %p204
    %s207 = sadd.s32 %s206, 1
    %p210 = scmp.eq.s32.totalorder %s20, 1
    %p211 = scmp.ne.s32.totalorder %s206, %s208
    %p212 = scmp.eq.s32.totalorder %s20, 0
    %p213 = por %p211, %p212
    %p214 = scmp.ne.s32.totalorder %s206, %s208
    %p215 = scmp.eq.s32.totalorder %s25, 1
    %p216 = por %p214, %p215
    %p217 = scmp.ne.s32.totalorder %s208, %s209
    %p218 = scmp.eq.s32.totalorder %s25, 0
    %p219 = por %p217, %p218
    %p220 = scmp.ne.s32.totalorder %s208, %s209
    %p221 = scmp.eq.s32.totalorder %s26, 1
    %p222 = por %p220, %p221
    %p224 = scmp.ne.s32.totalorder %s209, %s223
    %p225 = scmp.eq.s32.totalorder %s26, 0
    %p226 = por %p224, %p225
    %s228 = sadd.s32 %s227, 1
    %p231 = scmp.eq.s32.totalorder %s20, 1
    %p232 = scmp.ne.s32.totalorder %s227, %s229
    %p233 = scmp.eq.s32.totalorder %s20, 0
    %p234 = por %p232, %p233
    %p235 = scmp.ne.s32.totalorder %s227, %s229
    %p236 = scmp.eq.s32.totalorder %s25, 1
    %p237 = por %p235, %p236
    %p238 = scmp.ne.s32.totalorder %s229, %s230
    %p239 = scmp.eq.s32.totalorder %s25, 0
    %p240 = por %p238, %p239
    %p241 = scmp.ne.s32.totalorder %s229, %s230
    %p242 = scmp.eq.s32.totalorder %s26, 1
    %p243 = por %p241, %p242
    %p245 = scmp.ne.s32.totalorder %s230, %s244
    %p246 = scmp.eq.s32.totalorder %s26, 0
    %p247 = por %p245, %p246
    %s249 = sadd.s32 %s248, 1
    %p252 = scmp.eq.s32.totalorder %s20, 1
    %p253 = scmp.ne.s32.totalorder %s248, %s250
    %p254 = scmp.eq.s32.totalorder %s20, 0
    %p255 = por %p253, %p254
    %p256 = scmp.ne.s32.totalorder %s248, %s250
    %p257 = scmp.eq.s32.totalorder %s25, 1
    %p258 = por %p256, %p257
    %p259 = scmp.ne.s32.totalorder %s250, %s251
    %p260 = scmp.eq.s32.totalorder %s25, 0
    %p261 = por %p259, %p260
    %p262 = scmp.ne.s32.totalorder %s250, %s251
    %p263 = scmp.eq.s32.totalorder %s26, 1
    %p264 = por %p262, %p263
    %p266 = scmp.ne.s32.totalorder %s251, %s265
    %p267 = scmp.eq.s32.totalorder %s26, 0
    %p268 = por %p266, %p267
    %s270 = sadd.s32 %s269, 1
    %p273 = scmp.eq.s32.totalorder %s20, 1
    %p274 = scmp.ne.s32.totalorder %s269, %s271
    %p275 = scmp.eq.s32.totalorder %s20, 0
    %p276 = por %p274, %p275
    %p277 = scmp.ne.s32.totalorder %s269, %s271
    %p278 = scmp.eq.s32.totalorder %s25, 1
    %p279 = por %p277, %p278
    %p280 = scmp.ne.s32.totalorder %s271, %s272
    %p281 = scmp.eq.s32.totalorder %s25, 0
    %p282 = por %p280, %p281
    %p283 = scmp.ne.s32.totalorder %s271, %s272
    %p284 = scmp.eq.s32.totalorder %s26, 1
    %p285 = por %p283, %p284
    %p287 = scmp.ne.s32.totalorder %s272, %s286
    %p288 = scmp.eq.s32.totalorder %s26, 0
    %p289 = por %p287, %p288
    %s291 = sadd.s32 %s290, 1
    %p294 = scmp.eq.s32.totalorder %s20, 1
    %p295 = scmp.ne.s32.totalorder %s290, %s292
    %p296 = scmp.eq.s32.totalorder %s20, 0
    %p297 = por %p295, %p296
    %p298 = scmp.ne.s32.totalorder %s290, %s292
    %p299 = scmp.eq.s32.totalorder %s25, 1
    %p300 = por %p298, %p299
    %p301 = scmp.ne.s32.totalorder %s292, %s293
    %p302 = scmp.eq.s32.totalorder %s25, 0
    %p303 = por %p301, %p302
    %p304 = scmp.ne.s32.totalorder %s292, %s293
    %p305 = scmp.eq.s32.totalorder %s26, 1
    %p306 = por %p304, %p305
    %p308 = scmp.ne.s32.totalorder %s293, %s307
    %p309 = scmp.eq.s32.totalorder %s26, 0
    %p310 = por %p308, %p309
    %s312 = sadd.s32 %s311, 1
    %p315 = scmp.eq.s32.totalorder %s20, 1
    %p316 = scmp.ne.s32.totalorder %s311, %s313
    %p317 = scmp.eq.s32.totalorder %s20, 0
    %p318 = por %p316, %p317
    %p319 = scmp.ne.s32.totalorder %s311, %s313
    %p320 = scmp.eq.s32.totalorder %s25, 1
    %p321 = por %p319, %p320
    %p322 = scmp.ne.s32.totalorder %s313, %s314
    %p323 = scmp.eq.s32.totalorder %s25, 0
    %p324 = por %p322, %p323
    %p325 = scmp.ne.s32.totalorder %s313, %s314
    %p326 = scmp.eq.s32.totalorder %s26, 1
    %p327 = por %p325, %p326
    %p329 = scmp.ne.s32.totalorder %s314, %s328
    %p330 = scmp.eq.s32.totalorder %s26, 0
    %p331 = por %p329, %p330
    %s332 = ssub.s32 %s20, %s27
    %p333 = scmp.eq.s32.totalorder %s332, 0
    %s335 = sadd.s32 %s334, 1
    %s336 = scalar_select %p333, %s334, %s335
    %p339 = pneg %p333
    %p340 = scmp.eq.s32.totalorder %s20, 1
    %p341 = por %p339, %p340
    %p342 = scmp.ne.s32.totalorder %s334, %s337
    %p343 = scmp.eq.s32.totalorder %s20, 0
    %p344 = por %p342, %p343
    %p345 = scmp.ne.s32.totalorder %s334, %s337
    %p346 = scmp.eq.s32.totalorder %s25, 1
    %p347 = por %p345, %p346
    %p348 = scmp.ne.s32.totalorder %s337, %s338
    %p349 = scmp.eq.s32.totalorder %s25, 0
    %p350 = por %p348, %p349
    %p351 = scmp.ne.s32.totalorder %s337, %s338
    %p352 = scmp.eq.s32.totalorder %s26, 1
    %p353 = por %p351, %p352
    %p355 = scmp.ne.s32.totalorder %s338, %s354
    %p356 = scmp.eq.s32.totalorder %s26, 0
    %p357 = por %p355, %p356
    %p358 = scmp.le.s32.totalorder 1, %s20
    %p359 = scmp.lt.s32.totalorder %s20, 3
    %p360 = pnand %p358, %p359
    %p361 = pneg %p360
    // Predicated region
    $region9: #{sentence_classification_forward.5} parent=5 // pred_check
      _
    $region10: #{sentence_classification_forward.5} parent=5 // pred_check_branch
      %363 = sbr.rel (%p360) target = $region12
    $region11: #{sentence_classification_forward.5} parent=5 // pred_region
      %s364 = ssub.s32 %s20, 1
      // Predicated region
      $region13: #{sentence_classification_forward.5} parent=11 // pred_check
        %p365 = pneg %p93
      $region14: #{sentence_classification_forward.5} parent=11 // pred_check_branch
        %367 = sbr.rel (%p365) target = $region16
      $region15: #{sentence_classification_forward.5} parent=11 // pred_region
        _
      $region16: #{sentence_classification_forward.5} parent=11 // pred_fallthru
        _
      // Predicated region
      $region17: #{sentence_classification_forward.5} parent=11 // pred_check
        %p368 = pneg %p114
      $region18: #{sentence_classification_forward.5} parent=11 // pred_check_branch
        %370 = sbr.rel (%p368) target = $region20
      $region19: #{sentence_classification_forward.5} parent=11 // pred_region
        _
      $region20: #{sentence_classification_forward.5} parent=11 // pred_fallthru
        _
      // Predicated region
      $region21: #{sentence_classification_forward.5} parent=11 // pred_check
        %p371 = pneg %p135
      $region22: #{sentence_classification_forward.5} parent=11 // pred_check_branch
        %373 = sbr.rel (%p371) target = $region24
      $region23: #{sentence_classification_forward.5} parent=11 // pred_region
        _
      $region24: #{sentence_classification_forward.5} parent=11 // pred_fallthru
        _
      // Predicated region
      $region25: #{sentence_classification_forward.5} parent=11 // pred_check
        %p374 = pneg %p156
      $region26: #{sentence_classification_forward.5} parent=11 // pred_check_branch
        %376 = sbr.rel (%p374) target = $region28
      $region27: #{sentence_classification_forward.5} parent=11 // pred_region
        _
      $region28: #{sentence_classification_forward.5} parent=11 // pred_fallthru
        _
      // Predicated region
      $region29: #{sentence_classification_forward.5} parent=11 // pred_check
        %p377 = pneg %p177
      $region30: #{sentence_classification_forward.5} parent=11 // pred_check_branch
        %379 = sbr.rel (%p377) target = $region32
      $region31: #{sentence_classification_forward.5} parent=11 // pred_region
        _
      $region32: #{sentence_classification_forward.5} parent=11 // pred_fallthru
        _
      // Predicated region
      $region33: #{sentence_classification_forward.5} parent=11 // pred_check
        %p380 = pneg %p198
      $region34: #{sentence_classification_forward.5} parent=11 // pred_check_branch
        %382 = sbr.rel (%p380) target = $region36
      $region35: #{sentence_classification_forward.5} parent=11 // pred_region
        _
      $region36: #{sentence_classification_forward.5} parent=11 // pred_fallthru
        _
      // Predicated region
      $region37: #{sentence_classification_forward.5} parent=11 // pred_check
        %p383 = pneg %p219
      $region38: #{sentence_classification_forward.5} parent=11 // pred_check_branch
        %385 = sbr.rel (%p383) target = $region40
      $region39: #{sentence_classification_forward.5} parent=11 // pred_region
        _
      $region40: #{sentence_classification_forward.5} parent=11 // pred_fallthru
        _
      // Predicated region
      $region41: #{sentence_classification_forward.5} parent=11 // pred_check
        %p386 = pneg %p240
      $region42: #{sentence_classification_forward.5} parent=11 // pred_check_branch
        %388 = sbr.rel (%p386) target = $region44
      $region43: #{sentence_classification_forward.5} parent=11 // pred_region
        _
      $region44: #{sentence_classification_forward.5} parent=11 // pred_fallthru
        _
      // Predicated region
      $region45: #{sentence_classification_forward.5} parent=11 // pred_check
        %p389 = pneg %p261
      $region46: #{sentence_classification_forward.5} parent=11 // pred_check_branch
        %391 = sbr.rel (%p389) target = $region48
      $region47: #{sentence_classification_forward.5} parent=11 // pred_region
        _
      $region48: #{sentence_classification_forward.5} parent=11 // pred_fallthru
        _
      // Predicated region
      $region49: #{sentence_classification_forward.5} parent=11 // pred_check
        %p392 = pneg %p282
      $region50: #{sentence_classification_forward.5} parent=11 // pred_check_branch
        %394 = sbr.rel (%p392) target = $region52
      $region51: #{sentence_classification_forward.5} parent=11 // pred_region
        _
      $region52: #{sentence_classification_forward.5} parent=11 // pred_fallthru
        _
      // Predicated region
      $region53: #{sentence_classification_forward.5} parent=11 // pred_check
        %p395 = pneg %p303
      $region54: #{sentence_classification_forward.5} parent=11 // pred_check_branch
        %397 = sbr.rel (%p395) target = $region56
      $region55: #{sentence_classification_forward.5} parent=11 // pred_region
        _
      $region56: #{sentence_classification_forward.5} parent=11 // pred_fallthru
        _
      // Predicated region
      $region57: #{sentence_classification_forward.5} parent=11 // pred_check
        %p398 = pneg %p324
      $region58: #{sentence_classification_forward.5} parent=11 // pred_check_branch
        %400 = sbr.rel (%p398) target = $region60
      $region59: #{sentence_classification_forward.5} parent=11 // pred_region
        _
      $region60: #{sentence_classification_forward.5} parent=11 // pred_fallthru
        _
    $region12: #{sentence_classification_forward.5} parent=5 // pred_fallthru
      _
    %p401 = scmp.lt.s32.totalorder %s20, 2
    // Predicated region
    $region61: #{sentence_classification_forward.5} parent=5 // pred_check
      %p402 = pneg %p401
    $region62: #{sentence_classification_forward.5} parent=5 // pred_check_branch
      %404 = sbr.rel (%p402) target = $region64
    $region63: #{sentence_classification_forward.5} parent=5 // pred_region
      // Predicated region
      $region65: #{sentence_classification_forward.5} parent=63 // pred_check
        %p405 = pneg %p40
      $region66: #{sentence_classification_forward.5} parent=63 // pred_check_branch
        %407 = sbr.rel (%p405) target = $region68
      $region67: #{sentence_classification_forward.5} parent=63 // pred_region
        %p408 = scmp.lt.s32.totalorder %s20, 1
        %s409 = scalar_select %p408, %s20, 1
        %s410 = smul.addr %s409, 8
        %s411 = scalar_lea.vmem %s0, %s410
      $region68: #{sentence_classification_forward.5} parent=63 // pred_fallthru
        _
      // Predicated region
      $region69: #{sentence_classification_forward.5} parent=63 // pred_check
        %p412 = pneg %p66
      $region70: #{sentence_classification_forward.5} parent=63 // pred_check_branch
        %414 = sbr.rel (%p412) target = $region72
      $region71: #{sentence_classification_forward.5} parent=63 // pred_region
        %p415 = scmp.lt.s32.totalorder %s20, 1
        %s416 = scalar_select %p415, %s20, 1
        %s417 = scalar_lea.vmem %s1, %s416
      $region72: #{sentence_classification_forward.5} parent=63 // pred_fallthru
        _
    $region64: #{sentence_classification_forward.5} parent=5 // pred_fallthru
      _
    %p418 = scmp.le.s32.totalorder 1, %s20
    %p419 = scmp.lt.s32.totalorder %s20, 3
    %p420 = pnand %p418, %p419
    %p421 = pneg %p420
    // Predicated region
    $region73: #{sentence_classification_forward.5} parent=5 // pred_check
      _
    $region74: #{sentence_classification_forward.5} parent=5 // pred_check_branch
      %423 = sbr.rel (%p420) target = $region76
    $region75: #{sentence_classification_forward.5} parent=5 // pred_region
      %s424 = ssub.s32 %s20, 1
      %p425 = scmp.lt.s32.totalorder %s25, 1
      %s426 = scalar_select %p425, %s25, 1
      %s427 = smul.addr %s426, 8
      %s428 = scalar_lea.vmem %s0, %s427
      %p429 = pneg %p46
      %p430 = pneg %p43
      %p431 = scmp.lt.s32.totalorder %s25, 1
      %s432 = scalar_select %p431, %s25, 1
      %s433 = scalar_lea.vmem %s1, %s432
      %p434 = pneg %p72
      %p435 = pneg %p69
      %p436 = pneg %p93
      %p437 = pneg %p90
      %p438 = pneg %p114
      %p439 = pneg %p111
      %p440 = pneg %p135
      %p441 = pneg %p132
      %p442 = pneg %p156
      %p443 = pneg %p153
      %p444 = pneg %p177
      %p445 = pneg %p174
      %p446 = pneg %p198
      %p447 = pneg %p195
      %p448 = pneg %p219
      %p449 = pneg %p216
      %p450 = pneg %p240
      %p451 = pneg %p237
      %p452 = pneg %p261
      %p453 = pneg %p258
      %p454 = pneg %p282
      %p455 = pneg %p279
      %p456 = pneg %p303
      %p457 = pneg %p300
      %p458 = pneg %p324
      %p459 = pneg %p321
      %p460 = pneg %p350
      %p461 = pneg %p347
      %p462 = scmp.lt.s32.totalorder %s25, 1
      %s463 = scalar_select %p462, %s25, 1
      %s464 = smul.addr %s463, 8
      %s465 = scalar_lea.vmem %s14, %s464
      %p466 = scmp.lt.s32.totalorder %s25, 1
      %s467 = scalar_select %p466, %s25, 1
      %s468 = smul.addr %s467, 8
      %s469 = scalar_lea.vmem %s0, %s468
      %p470 = scmp.lt.s32.totalorder %s25, 1
      %s471 = scalar_select %p470, %s25, 1
      %s472 = scalar_lea.vmem %s1, %s471
      %p473 = scmp.lt.s32.totalorder %s25, 1
      %s474 = scalar_select %p473, %s25, 1
      %s475 = smul.addr %s474, 8
      %s476 = scalar_lea.vmem %s14, %s475
      %v478 = vld [vmem:[%s469] sm:$0xff]
      %v479 = vpack.c.bf16 %v478, %v478
      %v480 = vld [vmem:[%s2] sm:$0xf]
      %v481 = vld [vmem:[%s2 + $0x4] sm:$0xf]
      %v482 = vld [vmem:[%s2 + $0x8] sm:$0xf]
      %v483 = vld [vmem:[%s2 + $0xc] sm:$0xf]
      %v484 = vld [vmem:[%s3] sm:$0x1]
      %v486 = vlaneseq
      %v487 = vshrl.u32 %v486, 7
      %v488 = vsub.s32 0, %v487
      %v489 = vrot.slane %v484, %v488
      %v495 = vunpack.c.l.b16 %v480
      %v496 = vunpack.c.l.b16 %v481
      %v497 = vunpack.c.l.b16 %v482
      %v498 = vunpack.c.l.b16 %v483
      %v499 = vpack.c.b16 %v496, %v495
      %v500 = vpack.c.b16 %v498, %v497
      %vm503 = vcmask 261120
      %v505 = vsel %vm503, %v479, 0
      %507 = vmatprep.subr.bf16.mxu0 0
      %508 = vmatpush1.bf16.msra.mxu0 0
      %509 = vmatprep.subr.bf16.mxu0 0
      %510 = vmatpush1.bf16.msra.mxu0 0
      %511 = vmatprep.subr.bf16.mxu0 0
      %512 = vmatpush1.bf16.msra.mxu0 0
      %513 = vmatprep.subr.bf16.mxu0 0
      %514 = vmatpush1.bf16.msra.mxu0 0
      %515 = vmatprep.subr.bf16.mxu0 0
      %516 = vmatpush1.bf16.msra.mxu0 0
      %517 = vmatprep.subr.bf16.mxu0 0
      %518 = vmatpush1.bf16.msra.mxu0 0
      %519 = vmatprep.subr.bf16.mxu0 0
      %520 = vmatpush1.bf16.msra.mxu0 %v500
      %521 = vmatprep.subr.bf16.mxu0 0
      %522 = vmatpush1.bf16.msra.mxu0 %v499
      %523 = vmatprep.subr.bf16.mxu0 0
      %524 = vmatpush2.bf16.msra.mxu0 0
      %525 = vmatprep.subr.bf16.mxu0 0
      %526 = vmatpush2.bf16.msra.mxu0 0
      %527 = vmatprep.subr.bf16.mxu0 0
      %528 = vmatpush2.bf16.msra.mxu0 0
      %529 = vmatprep.subr.bf16.mxu0 0
      %530 = vmatpush2.bf16.msra.mxu0 0
      %531 = vmatprep.subr.bf16.mxu0 0
      %532 = vmatpush2.bf16.msra.mxu0 0
      %533 = vmatprep.subr.bf16.mxu0 0
      %534 = vmatpush2.bf16.msra.mxu0 0
      %535 = vmatprep.subr.bf16.mxu0 0
      %536 = vmatpush2.bf16.msra.mxu0 0
      %537 = vmatprep.subr.bf16.mxu0 0
      %538 = vmatpush2.bf16.msra.mxu0 0
      %539 = vmatprep.mubr.bf16.mxu0 0
      %540 = vmatmul.mubr.bf16.gmra.mxu0 %v505
      %v541 = vpop.f32.mrf.mxu0
      %v542 = vadd.f32 %v489, %v541
      %v543 = vpop.f32.mrf.mxu0
      %v544 = vpop.f32.mrf.mxu0
      %v545 = vpop.f32.mrf.mxu0
      %546 = vdwg.mxu0
      %v547 = vpack.c.bf16 %v542, %v542
      %549 = vrot.lane.b32.xlu0 %v542, 96
      %v550 = vpop.permute.xlu0 %549
      %552 = vxpose.xlu0.b32.start [1/16] %v550, 128
      %553 = vxpose.xlu0.b32.cont [2/16] 0.0, 128
      %554 = vxpose.xlu0.b32.cont [3/16] 0.0, 128
      %555 = vxpose.xlu0.b32.cont [4/16] 0.0, 128
      %556 = vxpose.xlu0.b32.cont [5/16] 0.0, 128
      %557 = vxpose.xlu0.b32.cont [6/16] 0.0, 128
      %558 = vxpose.xlu0.b32.cont [7/16] 0.0, 128
      %559 = vxpose.xlu0.b32.cont [8/16] 0.0, 128
      %560 = vxpose.xlu0.b32.cont [9/16] 0.0, 128
      %561 = vxpose.xlu0.b32.cont [10/16] 0.0, 128
      %562 = vxpose.xlu0.b32.cont [11/16] 0.0, 128
      %563 = vxpose.xlu0.b32.cont [12/16] 0.0, 128
      %564 = vxpose.xlu0.b32.cont [13/16] 0.0, 128
      %565 = vxpose.xlu0.b32.cont [14/16] 0.0, 128
      %566 = vxpose.xlu0.b32.cont [15/16] 0.0, 128
      %567 = vxpose.xlu0.b32.end [16/16] 0.0, 128
      %v568 = vpop.trf.xlu0
      %v569 = vpop.trf.xlu0
      %v570 = vpop.trf.xlu0
      %v571 = vpop.trf.xlu0
      %v572 = vpop.trf.xlu0
      %v573 = vpop.trf.xlu0
      %v574 = vpop.trf.xlu0
      %v575 = vpop.trf.xlu0
      %v576 = vpop.trf.xlu0
      %v577 = vpop.trf.xlu0
      %v578 = vpop.trf.xlu0
      %v579 = vpop.trf.xlu0
      %v580 = vpop.trf.xlu0
      %v581 = vpop.trf.xlu0
      %v582 = vpop.trf.xlu0
      %v583 = vpop.trf.xlu0
      %v584 = vpack.c.bf16 %v569, %v568
      %v585 = vpack.c.bf16 %v571, %v570
      %v586 = vld [vmem:[%s472] sm:$0x1]
      %v588 = vlaneseq
      %v589 = vshrl.u32 %v588, 7
      %v590 = vsub.s32 0, %v589
      %v591 = vrot.slane %v586, %v590
      %vm593 = vcmask 130048
      %v595 = vsel %vm593, %v547, 0
      %597 = vmatprep.subr.bf16.mxu0 0
      %598 = vmatpush1.bf16.msra.mxu0 0
      %599 = vmatprep.subr.bf16.mxu0 0
      %600 = vmatpush1.bf16.msra.mxu0 0
      %601 = vmatprep.subr.bf16.mxu0 0
      %602 = vmatpush1.bf16.msra.mxu0 0
      %603 = vmatprep.subr.bf16.mxu0 0
      %604 = vmatpush1.bf16.msra.mxu0 0
      %605 = vmatprep.subr.bf16.mxu0 0
      %606 = vmatpush1.bf16.msra.mxu0 0
      %607 = vmatprep.subr.bf16.mxu0 0
      %608 = vmatpush1.bf16.msra.mxu0 0
      %609 = vmatprep.subr.bf16.mxu0 0
      %610 = vmatpush1.bf16.msra.mxu0 0
      %611 = vmatprep.subr.bf16.mxu0 0
      %612 = vmatpush1.bf16.msra.mxu0 %v584
      %613 = vmatprep.subr.bf16.mxu0 0
      %614 = vmatpush2.bf16.msra.mxu0 0
      %615 = vmatprep.subr.bf16.mxu0 0
      %616 = vmatpush2.bf16.msra.mxu0 0
      %617 = vmatprep.subr.bf16.mxu0 0
      %618 = vmatpush2.bf16.msra.mxu0 0
      %619 = vmatprep.subr.bf16.mxu0 0
      %620 = vmatpush2.bf16.msra.mxu0 0
      %621 = vmatprep.subr.bf16.mxu0 0
      %622 = vmatpush2.bf16.msra.mxu0 0
      %623 = vmatprep.subr.bf16.mxu0 0
      %624 = vmatpush2.bf16.msra.mxu0 0
      %625 = vmatprep.subr.bf16.mxu0 0
      %626 = vmatpush2.bf16.msra.mxu0 0
      %627 = vmatprep.subr.bf16.mxu0 0
      %628 = vmatpush2.bf16.msra.mxu0 0
      %629 = vmatprep.mubr.bf16.mxu0 0
      %630 = vmatmul.mubr.bf16.gmra.mxu0 %v595
      %v631 = vpop.f32.mrf.mxu0
      %v632 = vadd.f32 0.0, %v631
      %v633 = vpop.f32.mrf.mxu0
      %v634 = vpop.f32.mrf.mxu0
      %v635 = vpop.f32.mrf.mxu0
      %636 = vdwg.mxu0
      %v637 = vmul.f32 %v632, 0.25
      %v638 = vadd.f32 %v637, %v591
      %vm639 = vcmask 64512
      %v640 = vsel %vm639, %v638, -inf
      %641 = vmax.xlane.f32.xlu0 %v640
      %v642 = vpop.xlane.xlu0 %641
      %v643 = vsub.f32 %v638, %v642
      %v644 = vmul.f32 %v643, 1.442695
      %v645 = vpow.pop %v644
      %v646 = vsel %vm639, %v645, 0.0
      %647 = vadd.xlane.f32.xlu0 %v646
      %v648 = vpop.xlane.xlu0 %647
      %v649 = vrcp.pop %v648
      %v650 = vmul.f32 %v645, %v649
      %v651 = vpack.c.bf16 %v650, %v650
      %653 = vrot.lane.b32.xlu0 %v547, 64
      %v654 = vpop.permute.xlu0 %653
      %v656 = vsel %vm639, %v651, 0
      %vm658 = vcmask 1043456
      %v660 = vsel %vm658, %v654, 0
      %662 = vmatprep.subr.bf16.mxu0 0
      %663 = vmatpush1.bf16.msra.mxu0 0
      %664 = vmatprep.subr.bf16.mxu0 0
      %665 = vmatpush1.bf16.msra.mxu0 0
      %666 = vmatprep.subr.bf16.mxu0 0
      %667 = vmatpush1.bf16.msra.mxu0 0
      %668 = vmatprep.subr.bf16.mxu0 0
      %669 = vmatpush1.bf16.msra.mxu0 0
      %670 = vmatprep.subr.bf16.mxu0 0
      %671 = vmatpush1.bf16.msra.mxu0 0
      %672 = vmatprep.subr.bf16.mxu0 0
      %673 = vmatpush1.bf16.msra.mxu0 0
      %674 = vmatprep.subr.bf16.mxu0 0
      %675 = vmatpush1.bf16.msra.mxu0 0
      %676 = vmatprep.subr.bf16.mxu0 0
      %677 = vmatpush1.bf16.msra.mxu0 %v660
      %678 = vmatprep.subr.bf16.mxu0 0
      %679 = vmatpush2.bf16.msra.mxu0 0
      %680 = vmatprep.subr.bf16.mxu0 0
      %681 = vmatpush2.bf16.msra.mxu0 0
      %682 = vmatprep.subr.bf16.mxu0 0
      %683 = vmatpush2.bf16.msra.mxu0 0
      %684 = vmatprep.subr.bf16.mxu0 0
      %685 = vmatpush2.bf16.msra.mxu0 0
      %686 = vmatprep.subr.bf16.mxu0 0
      %687 = vmatpush2.bf16.msra.mxu0 0
      %688 = vmatprep.subr.bf16.mxu0 0
      %689 = vmatpush2.bf16.msra.mxu0 0
      %690 = vmatprep.subr.bf16.mxu0 0
      %691 = vmatpush2.bf16.msra.mxu0 0
      %692 = vmatprep.subr.bf16.mxu0 0
      %693 = vmatpush2.bf16.msra.mxu0 0
      %694 = vmatprep.mubr.bf16.mxu0 0
      %695 = vmatmul.mubr.bf16.gmra.mxu0 %v656
      %v696 = vpop.f32.mrf.mxu0
      %v697 = vadd.f32 0.0, %v696
      %v698 = vpop.f32.mrf.mxu0
      %v699 = vpop.f32.mrf.mxu0
      %v700 = vpop.f32.mrf.mxu0
      %701 = vdwg.mxu0
      %702 = vrot.lane.b32.xlu0 %v547, 112
      %v703 = vpop.permute.xlu0 %702
      %v705 = vsel %vm593, %v703, 0
      %707 = vmatprep.subr.bf16.mxu0 0
      %708 = vmatpush1.bf16.msra.mxu0 0
      %709 = vmatprep.subr.bf16.mxu0 0
      %710 = vmatpush1.bf16.msra.mxu0 0
      %711 = vmatprep.subr.bf16.mxu0 0
      %712 = vmatpush1.bf16.msra.mxu0 0
      %713 = vmatprep.subr.bf16.mxu0 0
      %714 = vmatpush1.bf16.msra.mxu0 0
      %715 = vmatprep.subr.bf16.mxu0 0
      %716 = vmatpush1.bf16.msra.mxu0 0
      %717 = vmatprep.subr.bf16.mxu0 0
      %718 = vmatpush1.bf16.msra.mxu0 0
      %719 = vmatprep.subr.bf16.mxu0 0
      %720 = vmatpush1.bf16.msra.mxu0 0
      %721 = vmatprep.subr.bf16.mxu0 0
      %722 = vmatpush1.bf16.msra.mxu0 %v585
      %723 = vmatprep.subr.bf16.mxu0 0
      %724 = vmatpush2.bf16.msra.mxu0 0
      %725 = vmatprep.subr.bf16.mxu0 0
      %726 = vmatpush2.bf16.msra.mxu0 0
      %727 = vmatprep.subr.bf16.mxu0 0
      %728 = vmatpush2.bf16.msra.mxu0 0
      %729 = vmatprep.subr.bf16.mxu0 0
      %730 = vmatpush2.bf16.msra.mxu0 0
      %731 = vmatprep.subr.bf16.mxu0 0
      %732 = vmatpush2.bf16.msra.mxu0 0
      %733 = vmatprep.subr.bf16.mxu0 0
      %734 = vmatpush2.bf16.msra.mxu0 0
      %735 = vmatprep.subr.bf16.mxu0 0
      %736 = vmatpush2.bf16.msra.mxu0 0
      %737 = vmatprep.subr.bf16.mxu0 0
      %738 = vmatpush2.bf16.msra.mxu0 0
      %739 = vmatprep.mubr.bf16.mxu0 0
      %740 = vmatmul.mubr.bf16.gmra.mxu0 %v705
      %v741 = vpop.f32.mrf.mxu0
      %v742 = vadd.f32 0.0, %v741
      %v743 = vpop.f32.mrf.mxu0
      %v744 = vpop.f32.mrf.mxu0
      %v745 = vpop.f32.mrf.mxu0
      %746 = vdwg.mxu0
      %v747 = vmul.f32 %v742, 0.25
      %v748 = vadd.f32 %v747, %v591
      %v749 = vsel %vm639, %v748, -inf
      %750 = vmax.xlane.f32.xlu0 %v749
      %v751 = vpop.xlane.xlu0 %750
      %v752 = vsub.f32 %v748, %v751
      %v753 = vmul.f32 %v752, 1.442695
      %v754 = vpow.pop %v753
      %v755 = vsel %vm639, %v754, 0.0
      %756 = vadd.xlane.f32.xlu0 %v755
      %v757 = vpop.xlane.xlu0 %756
      %v758 = vrcp.pop %v757
      %v759 = vmul.f32 %v754, %v758
      %v760 = vpack.c.bf16 %v759, %v759
      %761 = vrot.lane.b32.xlu0 %v547, 48
      %v762 = vpop.permute.xlu0 %761
      %v764 = vsel %vm639, %v760, 0
      %v767 = vsel %vm658, %v762, 0
      %769 = vmatprep.subr.bf16.mxu0 0
      %770 = vmatpush1.bf16.msra.mxu0 0
      %771 = vmatprep.subr.bf16.mxu0 0
      %772 = vmatpush1.bf16.msra.mxu0 0
      %773 = vmatprep.subr.bf16.mxu0 0
      %774 = vmatpush1.bf16.msra.mxu0 0
      %775 = vmatprep.subr.bf16.mxu0 0
      %776 = vmatpush1.bf16.msra.mxu0 0
      %777 = vmatprep.subr.bf16.mxu0 0
      %778 = vmatpush1.bf16.msra.mxu0 0
      %779 = vmatprep.subr.bf16.mxu0 0
      %780 = vmatpush1.bf16.msra.mxu0 0
      %781 = vmatprep.subr.bf16.mxu0 0
      %782 = vmatpush1.bf16.msra.mxu0 0
      %783 = vmatprep.subr.bf16.mxu0 0
      %784 = vmatpush1.bf16.msra.mxu0 %v767
      %785 = vmatprep.subr.bf16.mxu0 0
      %786 = vmatpush2.bf16.msra.mxu0 0
      %787 = vmatprep.subr.bf16.mxu0 0
      %788 = vmatpush2.bf16.msra.mxu0 0
      %789 = vmatprep.subr.bf16.mxu0 0
      %790 = vmatpush2.bf16.msra.mxu0 0
      %791 = vmatprep.subr.bf16.mxu0 0
      %792 = vmatpush2.bf16.msra.mxu0 0
      %793 = vmatprep.subr.bf16.mxu0 0
      %794 = vmatpush2.bf16.msra.mxu0 0
      %795 = vmatprep.subr.bf16.mxu0 0
      %796 = vmatpush2.bf16.msra.mxu0 0
      %797 = vmatprep.subr.bf16.mxu0 0
      %798 = vmatpush2.bf16.msra.mxu0 0
      %799 = vmatprep.subr.bf16.mxu0 0
      %800 = vmatpush2.bf16.msra.mxu0 0
      %801 = vmatprep.mubr.bf16.mxu0 0
      %802 = vmatmul.mubr.bf16.gmra.mxu0 %v764
      %v803 = vpop.f32.mrf.mxu0
      %v804 = vadd.f32 0.0, %v803
      %v805 = vpop.f32.mrf.mxu0
      %v806 = vpop.f32.mrf.mxu0
      %v807 = vpop.f32.mrf.mxu0
      %808 = vdwg.mxu0
      %810 = vrot.lane.b32.xlu0 %v804, 16
      %v811 = vpop.permute.xlu0 %810
      %v813 = vsel %vm593, %v697, %v811
      %v814 = vpack.c.bf16 %v813, %v813
      %v815 = vld [vmem:[%s4] sm:$0xf]
      %v816 = vld [vmem:[%s4 + $0x4] sm:$0xf]
      %v817 = vld [vmem:[%s4 + $0x8] sm:$0xf]
      %v818 = vld [vmem:[%s4 + $0xc] sm:$0xf]
      %v819 = vld [vmem:[%s5] sm:$0x1]
      %v821 = vlaneseq
      %v822 = vshrl.u32 %v821, 7
      %v823 = vsub.s32 0, %v822
      %v824 = vrot.slane %v819, %v823
      %v830 = vunpack.c.l.b16 %v815
      %v831 = vunpack.c.l.b16 %v816
      %v832 = vunpack.c.l.b16 %v817
      %v833 = vunpack.c.l.b16 %v818
      %v834 = vpack.c.b16 %v831, %v830
      %v835 = vpack.c.b16 %v833, %v832
      %v839 = vsel %vm503, %v814, 0
      %841 = vmatprep.subr.bf16.mxu0 0
      %842 = vmatpush1.bf16.msra.mxu0 0
      %843 = vmatprep.subr.bf16.mxu0 0
      %844 = vmatpush1.bf16.msra.mxu0 0
      %845 = vmatprep.subr.bf16.mxu0 0
      %846 = vmatpush1.bf16.msra.mxu0 0
      %847 = vmatprep.subr.bf16.mxu0 0
      %848 = vmatpush1.bf16.msra.mxu0 0
      %849 = vmatprep.subr.bf16.mxu0 0
      %850 = vmatpush1.bf16.msra.mxu0 0
      %851 = vmatprep.subr.bf16.mxu0 0
      %852 = vmatpush1.bf16.msra.mxu0 0
      %853 = vmatprep.subr.bf16.mxu0 0
      %854 = vmatpush1.bf16.msra.mxu0 %v835
      %855 = vmatprep.subr.bf16.mxu0 0
      %856 = vmatpush1.bf16.msra.mxu0 %v834
      %857 = vmatprep.subr.bf16.mxu0 0
      %858 = vmatpush2.bf16.msra.mxu0 0
      %859 = vmatprep.subr.bf16.mxu0 0
      %860 = vmatpush2.bf16.msra.mxu0 0
      %861 = vmatprep.subr.bf16.mxu0 0
      %862 = vmatpush2.bf16.msra.mxu0 0
      %863 = vmatprep.subr.bf16.mxu0 0
      %864 = vmatpush2.bf16.msra.mxu0 0
      %865 = vmatprep.subr.bf16.mxu0 0
      %866 = vmatpush2.bf16.msra.mxu0 0
      %867 = vmatprep.subr.bf16.mxu0 0
      %868 = vmatpush2.bf16.msra.mxu0 0
      %869 = vmatprep.subr.bf16.mxu0 0
      %870 = vmatpush2.bf16.msra.mxu0 0
      %871 = vmatprep.subr.bf16.mxu0 0
      %872 = vmatpush2.bf16.msra.mxu0 0
      %873 = vmatprep.mubr.bf16.mxu0 0
      %874 = vmatmul.mubr.bf16.gmra.mxu0 %v839
      %v875 = vpop.f32.mrf.mxu0
      %v876 = vadd.f32 %v824, %v875
      %v877 = vpop.f32.mrf.mxu0
      %v878 = vpop.f32.mrf.mxu0
      %v879 = vpop.f32.mrf.mxu0
      %880 = vdwg.mxu0
      %v881 = vadd.f32 %v876, %v478
      %v882 = vld [vmem:[%s6] sm:$0x1]
      %v883 = vld [vmem:[%s7] sm:$0x1]
      %v884 = vsel %vm503, %v881, 0.0
      %885 = vadd.xlane.f32.xlu0 %v884
      %v886 = vpop.xlane.xlu0 %885
      %v887 = vrcp.pop 32.0
      %v888 = vmul.f32 %v886, %v887
      %v889 = vsub.f32 %v881, %v888
      %v890 = vmul.f32 %v889, %v889
      %v891 = vsel %vm503, %v890, 0.0
      %892 = vadd.xlane.f32.xlu0 %v891
      %v893 = vpop.xlane.xlu0 %892
      %v894 = vmul.f32 %v893, %v887
      %v895 = vadd.f32 %v894, 1e-12
      %v896 = vrsqrt.pop %v895
      %v897 = vmul.f32 %v889, %v896
      %v899 = vlaneseq
      %v900 = vshrl.u32 %v899, 7
      %v901 = vsub.s32 0, %v900
      %v902 = vrot.slane %v882, %v901
      %v904 = vmul.f32 %v897, %v902
      %v906 = vlaneseq
      %v907 = vshrl.u32 %v906, 7
      %v908 = vsub.s32 0, %v907
      %v909 = vrot.slane %v883, %v908
      %v911 = vadd.f32 %v904, %v909
      %v912 = vpack.c.bf16 %v911, %v911
      %v913 = vld [vmem:[%s8] sm:$0xf]
      %v914 = vld [vmem:[%s8 + $0x4] sm:$0xf]
      %v915 = vld [vmem:[%s8 + $0x8] sm:$0xf]
      %v916 = vld [vmem:[%s8 + $0xc] sm:$0xf]
      %v917 = vld [vmem:[%s9] sm:$0x1]
      %v919 = vlaneseq
      %v920 = vshrl.u32 %v919, 7
      %v921 = vsub.s32 0, %v920
      %v922 = vrot.slane %v917, %v921
      %v928 = vunpack.c.l.b16 %v913
      %v929 = vunpack.c.l.b16 %v914
      %v930 = vunpack.c.l.b16 %v915
      %v931 = vunpack.c.l.b16 %v916
      %v932 = vpack.c.b16 %v929, %v928
      %v933 = vpack.c.b16 %v931, %v930
      %v937 = vsel %vm503, %v912, 0
      %939 = vmatprep.subr.bf16.mxu0 0
      %940 = vmatpush1.bf16.msra.mxu0 0
      %941 = vmatprep.subr.bf16.mxu0 0
      %942 = vmatpush1.bf16.msra.mxu0 0
      %943 = vmatprep.subr.bf16.mxu0 0
      %944 = vmatpush1.bf16.msra.mxu0 0
      %945 = vmatprep.subr.bf16.mxu0 0
      %946 = vmatpush1.bf16.msra.mxu0 0
      %947 = vmatprep.subr.bf16.mxu0 0
      %948 = vmatpush1.bf16.msra.mxu0 0
      %949 = vmatprep.subr.bf16.mxu0 0
      %950 = vmatpush1.bf16.msra.mxu0 0
      %951 = vmatprep.subr.bf16.mxu0 0
      %952 = vmatpush1.bf16.msra.mxu0 %v933
      %953 = vmatprep.subr.bf16.mxu0 0
      %954 = vmatpush1.bf16.msra.mxu0 %v932
      %955 = vmatprep.subr.bf16.mxu0 0
      %956 = vmatpush2.bf16.msra.mxu0 0
      %957 = vmatprep.subr.bf16.mxu0 0
      %958 = vmatpush2.bf16.msra.mxu0 0
      %959 = vmatprep.subr.bf16.mxu0 0
      %960 = vmatpush2.bf16.msra.mxu0 0
      %961 = vmatprep.subr.bf16.mxu0 0
      %962 = vmatpush2.bf16.msra.mxu0 0
      %963 = vmatprep.subr.bf16.mxu0 0
      %964 = vmatpush2.bf16.msra.mxu0 0
      %965 = vmatprep.subr.bf16.mxu0 0
      %966 = vmatpush2.bf16.msra.mxu0 0
      %967 = vmatprep.subr.bf16.mxu0 0
      %968 = vmatpush2.bf16.msra.mxu0 0
      %969 = vmatprep.subr.bf16.mxu0 0
      %970 = vmatpush2.bf16.msra.mxu0 0
      %971 = vmatprep.mubr.bf16.mxu0 0
      %972 = vmatmul.mubr.bf16.gmra.mxu0 %v937
      %v973 = vpop.f32.mrf.mxu0
      %v974 = vadd.f32 %v922, %v973
      %v975 = vpop.f32.mrf.mxu0
      %v976 = vpop.f32.mrf.mxu0
      %v977 = vpop.f32.mrf.mxu0
      %978 = vdwg.mxu0
      %v979 = vmul.f32 %v974, %v974
      %v980 = vmul.f32 %v974, %v979
      %v981 = vmul.f32 %v980, 0.044715
      %v982 = vadd.f32 %v974, %v981
      %v983 = vmul.f32 %v982, 0.7978846
      %v984 = vtanh.pop %v983
      %v985 = vadd.f32 %v984, 1.0
      %v986 = vmul.f32 %v985, 0.5
      %v987 = vmul.f32 %v974, %v986
      %v988 = vpack.c.bf16 %v987, %v987
      %v989 = vld [vmem:[%s10] sm:$0xf]
      %v990 = vld [vmem:[%s10 + $0x4] sm:$0xf]
      %v991 = vld [vmem:[%s10 + $0x8] sm:$0xf]
      %v992 = vld [vmem:[%s10 + $0xc] sm:$0xf]
      %v993 = vld [vmem:[%s10 + $0x10] sm:$0xf]
      %v994 = vld [vmem:[%s10 + $0x14] sm:$0xf]
      %v995 = vld [vmem:[%s10 + $0x18] sm:$0xf]
      %v996 = vld [vmem:[%s10 + $0x1c] sm:$0xf]
      %v997 = vld [vmem:[%s11] sm:$0x1]
      %v999 = vlaneseq
      %v1000 = vshrl.u32 %v999, 7
      %v1001 = vsub.s32 0, %v1000
      %v1002 = vrot.slane %v997, %v1001
      %v1012 = vunpack.c.l.b16 %v989
      %v1013 = vunpack.c.l.b16 %v990
      %v1014 = vunpack.c.l.b16 %v991
      %v1015 = vunpack.c.l.b16 %v992
      %v1016 = vunpack.c.l.b16 %v993
      %v1017 = vunpack.c.l.b16 %v994
      %v1018 = vunpack.c.l.b16 %v995
      %v1019 = vunpack.c.l.b16 %v996
      %v1020 = vpack.c.b16 %v1013, %v1012
      %v1021 = vpack.c.b16 %v1015, %v1014
      %v1022 = vpack.c.b16 %v1017, %v1016
      %v1023 = vpack.c.b16 %v1019, %v1018
      %vm1028 = vcmask 523264
      %v1030 = vsel %vm1028, %v988, 0
      %1032 = vmatprep.subr.bf16.mxu0 0
      %1033 = vmatpush1.bf16.msra.mxu0 0
      %1034 = vmatprep.subr.bf16.mxu0 0
      %1035 = vmatpush1.bf16.msra.mxu0 0
      %1036 = vmatprep.subr.bf16.mxu0 0
      %1037 = vmatpush1.bf16.msra.mxu0 0
      %1038 = vmatprep.subr.bf16.mxu0 0
      %1039 = vmatpush1.bf16.msra.mxu0 0
      %1040 = vmatprep.subr.bf16.mxu0 0
      %1041 = vmatpush1.bf16.msra.mxu0 %v1023
      %1042 = vmatprep.subr.bf16.mxu0 0
      %1043 = vmatpush1.bf16.msra.mxu0 %v1022
      %1044 = vmatprep.subr.bf16.mxu0 0
      %1045 = vmatpush1.bf16.msra.mxu0 %v1021
      %1046 = vmatprep.subr.bf16.mxu0 0
      %1047 = vmatpush1.bf16.msra.mxu0 %v1020
      %1048 = vmatprep.subr.bf16.mxu0 0
      %1049 = vmatpush2.bf16.msra.mxu0 0
      %1050 = vmatprep.subr.bf16.mxu0 0
      %1051 = vmatpush2.bf16.msra.mxu0 0
      %1052 = vmatprep.subr.bf16.mxu0 0
      %1053 = vmatpush2.bf16.msra.mxu0 0
      %1054 = vmatprep.subr.bf16.mxu0 0
      %1055 = vmatpush2.bf16.msra.mxu0 0
      %1056 = vmatprep.subr.bf16.mxu0 0
      %1057 = vmatpush2.bf16.msra.mxu0 0
      %1058 = vmatprep.subr.bf16.mxu0 0
      %1059 = vmatpush2.bf16.msra.mxu0 0
      %1060 = vmatprep.subr.bf16.mxu0 0
      %1061 = vmatpush2.bf16.msra.mxu0 0
      %1062 = vmatprep.subr.bf16.mxu0 0
      %1063 = vmatpush2.bf16.msra.mxu0 0
      %1064 = vmatprep.mubr.bf16.mxu0 0
      %1065 = vmatmul.mubr.bf16.gmra.mxu0 %v1030
      %v1066 = vpop.f32.mrf.mxu0
      %v1067 = vadd.f32 %v1002, %v1066
      %v1068 = vpop.f32.mrf.mxu0
      %v1069 = vpop.f32.mrf.mxu0
      %v1070 = vpop.f32.mrf.mxu0
      %1071 = vdwg.mxu0
      %v1072 = vadd.f32 %v1067, %v911
      %v1073 = vld [vmem:[%s12] sm:$0x1]
      %v1074 = vld [vmem:[%s13] sm:$0x1]
      %v1075 = vsel %vm503, %v1072, 0.0
      %1076 = vadd.xlane.f32.xlu0 %v1075
      %v1077 = vpop.xlane.xlu0 %1076
      %v1078 = vmul.f32 %v1077, %v887
      %v1079 = vsub.f32 %v1072, %v1078
      %v1080 = vmul.f32 %v1079, %v1079
      %v1081 = vsel %vm503, %v1080, 0.0
      %1082 = vadd.xlane.f32.xlu0 %v1081
      %v1083 = vpop.xlane.xlu0 %1082
      %v1084 = vmul.f32 %v1083, %v887
      %v1085 = vadd.f32 %v1084, 1e-12
      %v1086 = vrsqrt.pop %v1085
      %v1087 = vmul.f32 %v1079, %v1086
      %v1089 = vlaneseq
      %v1090 = vshrl.u32 %v1089, 7
      %v1091 = vsub.s32 0, %v1090
      %v1092 = vrot.slane %v1073, %v1091
      %v1094 = vmul.f32 %v1087, %v1092
      %v1096 = vlaneseq
      %v1097 = vshrl.u32 %v1096, 7
      %v1098 = vsub.s32 0, %v1097
      %v1099 = vrot.slane %v1074, %v1098
      %v1101 = vadd.f32 %v1094, %v1099
      %1102 = vst.msk [vmem:[%s476] sm:$0xff] %vm503, %v1101
      %p1103 = scmp.lt.s32.totalorder %s25, 1
      %s1104 = scalar_select %p1103, %s25, 1
      %s1105 = smul.addr %s1104, 8
      %s1106 = scalar_lea.vmem %s14, %s1105
      // Predicated region
      $region77: #{sentence_classification_forward.5} parent=75 // pred_check
        %p1107 = pneg %p347
      $region78: #{sentence_classification_forward.5} parent=75 // pred_check_branch
        %1109 = sbr.rel (%p1107) target = $region80
      $region79: #{sentence_classification_forward.5} parent=75 // pred_region
        _
      $region80: #{sentence_classification_forward.5} parent=75 // pred_fallthru
        _
    $region76: #{sentence_classification_forward.5} parent=5 // pred_fallthru
      _
    %p1110 = scmp.le.s32.totalorder 2, %s20
    // Predicated region
    $region81: #{sentence_classification_forward.5} parent=5 // pred_check
      %p1111 = pneg %p1110
    $region82: #{sentence_classification_forward.5} parent=5 // pred_check_branch
      %1113 = sbr.rel (%p1111) target = $region84
    $region83: #{sentence_classification_forward.5} parent=5 // pred_region
      %s1114 = ssub.s32 %s20, 2
      // Predicated region
      $region85: #{sentence_classification_forward.5} parent=83 // pred_check
        %p1115 = pneg %p353
      $region86: #{sentence_classification_forward.5} parent=83 // pred_check_branch
        %1117 = sbr.rel (%p1115) target = $region88
      $region87: #{sentence_classification_forward.5} parent=83 // pred_region
        %p1118 = scmp.lt.s32.totalorder %s26, 1
        %s1119 = scalar_select %p1118, %s26, 1
        %s1120 = smul.addr %s1119, 8
        %s1121 = scalar_lea.vmem %s14, %s1120
      $region88: #{sentence_classification_forward.5} parent=83 // pred_fallthru
        _
    $region84: #{sentence_classification_forward.5} parent=5 // pred_fallthru
      _
  $region6: #{sentence_classification_forward.5} parent=0 // loop_footer
    %s24 = sadd.s32 1, %s20
  $region7: #{sentence_classification_forward.5} parent=0 // loop_footer_branch
    %19 = sbr.rel target = $region3
  $region8: #{sentence_classification_forward.5} parent=0 // loop_exit
    _

</llo_original>
